<compile_context>
chip_gen: v7x
topology: tpu7x:2x2x1
jax: 0.10.0
libtpu: 0.0.40
codegen_flags: <defaults>
</compile_context>

<pallas_src>
import functools

import jax
import jax.numpy as jnp
from jax import lax
from jax.experimental import pallas as pl
from jax.experimental.pallas import tpu as pltpu

_B1 = 0.9
_B2 = 0.999
_EPS = 1e-8


# ----------------------------------------------------------------------------
# Fused kernel: fuzzy graph + Adam intrinsic optimization + final loss
# ----------------------------------------------------------------------------
def _fused_elpigraph_kernel(x_ref, y0_ref, step_size_ref, inv_sqrt_bc2_ref,
                            y_out_ref, a_out_ref, loss_ref,
                            y_buf, m_buf, v_buf,
                            *, alpha_k, alpha_fg, lmda, mu, num_iter):
    f32 = jnp.float32
    X = x_ref[...]                          # (N, D)
    y0 = y0_ref[...]                        # (K, D)
    N, D = X.shape
    K = y0.shape[0]
    inv_n = 1.0 / float(N)

    # ---- fuzzy graph: A = sym( ParametrizedSoftMax(pdist(y0,y0), diag=100) ) ----
    gram0 = lax.dot_general(y0, y0, (((1,), (1,)), ((), ())),
                            preferred_element_type=f32)              # (K, K)
    y0_sq = jnp.sum(y0 * y0, axis=1)
    ydst = jnp.maximum(y0_sq[:, None] + y0_sq[None, :] - 2.0 * gram0, 0.0)
    rows = lax.broadcasted_iota(jnp.int32, (K, K), 0)
    cols = lax.broadcasted_iota(jnp.int32, (K, K), 1)
    ydst = jnp.where(rows == cols, 100.0, ydst)                       # diag = 100
    shg = jnp.clip(ydst + jnp.min(ydst), 0.0, 10.0)
    eg = jnp.exp(-alpha_fg * shg)                                     # exactly symmetric
    srow = jnp.sum(eg, axis=1, keepdims=True)                         # (K, 1)
    scol = jnp.sum(eg, axis=0, keepdims=True)                         # (1, K) == srow.T
    # (A + A.T)/2 without a transpose: row softmax of a symmetric matrix.
    A = 0.5 * eg * (1.0 / srow + 1.0 / scol)                          # (K, K), symmetric

    # ---- hoisted y-independent quantities --------------------------------------
    x2r = jnp.sum(X * X, axis=1)[None, :]                             # (1, N)
    offdiag = (rows != cols).astype(f32)
    triu = (cols > rows).astype(f32)
    deg = jnp.sum(A, axis=1, keepdims=True)                           # (K, 1)
    hmask = (deg > 1.0).astype(f32)                                   # (K, 1)
    B = A * offdiag                        # == triu(A,1) + triu(A,1).T since A symmetric
    Brow = jnp.sum(B, axis=1, keepdims=True)                          # (K, 1)

    def loss_and_grad(y, need_value, need_grad):
        """Loss and its analytic gradient w.r.t. y (A held constant)."""
        # fuzzy k-means distances, lane-dense (K, N) orientation
        y2c = jnp.sum(y * y, axis=1, keepdims=True)                   # (K, 1)
        xyT = lax.dot_general(y, X, (((1,), (1,)), ((), ())),
                              preferred_element_type=f32)             # (K, N)
        d_raw = y2c + x2r - 2.0 * xyT
        d = jnp.maximum(d_raw, 0.0)
        mglob = jnp.min(d)                                            # global min (spec: X + min(X))
        t = d + mglob
        s = jnp.clip(t, 0.0, 10.0)
        # ParametrizedSoftMax over the K axis, stabilized by a per-point shift
        # (softmax-invariant; keeps the normalizer >= 1, no subnormal trouble).
        s0 = jnp.min(s, axis=0, keepdims=True)                        # (1, N)
        e = jnp.exp(-alpha_k * (s - s0))
        r = jnp.sum(e, axis=0, keepdims=True)                         # (1, N), >= 1
        P = e / r
        w = jnp.sum(d * P, axis=0, keepdims=True)                     # (1, N)

        # harmonic pieces shared by value & grad
        nsum = lax.dot_general(A, y, (((1,), (0,)), ((), ())),
                               preferred_element_type=f32)            # (K, D)
        avg = jnp.where(deg > 1.0, nsum / deg, 0.0)
        diffh = y - avg

        value = None
        if need_value:
            mse = jnp.sum(w) * inv_n
            gram = lax.dot_general(y, y, (((1,), (1,)), ((), ())),
                                   preferred_element_type=f32)        # (K, K)
            y2r_kk = jnp.sum(y * y, axis=1)[None, :]
            sq = jnp.maximum(y2c + y2r_kk - 2.0 * gram, 0.0)
            stretch = jnp.sum(sq * A * triu)
            harm = jnp.sum(jnp.sum(diffh * diffh, axis=1, keepdims=True) * hmask)
            value = mse + lmda * stretch + mu * harm

        grad = None
        if need_grad:
            # dMSE/dd (includes softmax path, clip gate, and the global-min path)
            gate = (t < 10.0).astype(f32)
            T = (-alpha_k * inv_n) * P * (d - w) * gate
            S_T = jnp.sum(T)
            mm = (d == mglob).astype(f32)
            mm = mm / jnp.sum(mm)
            G = (P * inv_n + T + S_T * mm) * (d_raw > 0.0).astype(f32)  # (K, N)
            gsum = jnp.sum(G, axis=1, keepdims=True)                     # (K, 1)
            gX = lax.dot_general(G, X, (((1,), (0,)), ((), ())),
                                 preferred_element_type=f32)             # (K, D)
            grad_mse = 2.0 * (gsum * y - gX)

            # stretch: sum_{i<j} A_ij ||y_i - y_j||^2
            By = lax.dot_general(B, y, (((1,), (0,)), ((), ())),
                                 preferred_element_type=f32)             # (K, D)
            grad_stretch = 2.0 * (Brow * y - By)

            # harmonic: direct path + path through A @ y (A symmetric => A == A.T)
            C = 2.0 * hmask * diffh
            Cd = jnp.where(deg > 1.0, C / deg, 0.0)
            ACd = lax.dot_general(A, Cd, (((1,), (0,)), ((), ())),
                                  preferred_element_type=f32)
            grad_harm = C - ACd

            grad = grad_mse + lmda * grad_stretch + mu * grad_harm
        return value, grad

    # ---- Adam intrinsic optimization, fully VMEM-resident ----------------------
    y_buf[...] = y0
    m_buf[...] = jnp.zeros((K, D), f32)
    v_buf[...] = jnp.zeros((K, D), f32)

    def adam_step(i, carry):
        y = y_buf[...]
        _, g = loss_and_grad(y, need_value=False, need_grad=True)
        m_new = _B1 * m_buf[...] + (1.0 - _B1) * g
        v_new = _B2 * v_buf[...] + (1.0 - _B2) * (g * g)
        m_buf[...] = m_new
        v_buf[...] = v_new
        # torch.optim.Adam: p -= (lr / bc1) * m / (sqrt(v)/sqrt(bc2) + eps)
        denom = jnp.sqrt(v_new) * inv_sqrt_bc2_ref[i] + _EPS
        y_buf[...] = y - step_size_ref[i] * (m_new / denom)
        return carry

    lax.fori_loop(0, num_iter, adam_step, 0)

    # ---- final loss at the optimized y ------------------------------------------
    y_fin = y_buf[...]
    loss, _ = loss_and_grad(y_fin, need_value=True, need_grad=False)
    y_out_ref[...] = y_fin
    a_out_ref[...] = A
    loss_ref[0, 0] = loss


# ----------------------------------------------------------------------------
# Wrapper
# ----------------------------------------------------------------------------
@functools.partial(jax.jit, static_argnames=("alpha_k", "alpha_fg", "lmda",
                                             "mu", "lr", "num_iter"))
def fuzzy_elpigraph_forward(X, y0, *, alpha_k, alpha_fg, lmda, mu, lr, num_iter):
    N, D = X.shape
    K = y0.shape[0]
    steps = max(int(num_iter), 1)
    t = jnp.arange(1, steps + 1, dtype=jnp.float32)
    step_size = jnp.float32(lr) / (1.0 - jnp.float32(_B1) ** t)       # lr / bias_corr1
    inv_sqrt_bc2 = 1.0 / jnp.sqrt(1.0 - jnp.float32(_B2) ** t)        # 1 / sqrt(bias_corr2)

    kernel = functools.partial(_fused_elpigraph_kernel,
                               alpha_k=float(alpha_k), alpha_fg=float(alpha_fg),
                               lmda=float(lmda), mu=float(mu),
                               num_iter=int(num_iter))
    y_out, a_out, loss = pl.pallas_call(
        kernel,
        out_shape=(jax.ShapeDtypeStruct((K, D), jnp.float32),
                   jax.ShapeDtypeStruct((K, K), jnp.float32),
                   jax.ShapeDtypeStruct((1, 1), jnp.float32)),
        in_specs=[pl.BlockSpec(memory_space=pltpu.MemorySpace.VMEM),
                  pl.BlockSpec(memory_space=pltpu.MemorySpace.VMEM),
                  pl.BlockSpec(memory_space=pltpu.MemorySpace.SMEM),
                  pl.BlockSpec(memory_space=pltpu.MemorySpace.SMEM)],
        out_specs=(pl.BlockSpec(memory_space=pltpu.MemorySpace.VMEM),
                   pl.BlockSpec(memory_space=pltpu.MemorySpace.VMEM),
                   pl.BlockSpec(memory_space=pltpu.MemorySpace.SMEM)),
        scratch_shapes=[pltpu.VMEM((K, D), jnp.float32),
                        pltpu.VMEM((K, D), jnp.float32),
                        pltpu.VMEM((K, D), jnp.float32)],
    )(X.astype(jnp.float32), y0.astype(jnp.float32), step_size, inv_sqrt_bc2)
    return y_out, a_out, loss[0, 0]


# ----------------------------------------------------------------------------
# Module equivalent
# ----------------------------------------------------------------------------
class FuzzyElpiGraph:
    def __init__(self, dimension, number_of_nodes, key,
                 alphaKmeans=5.0, alphaFuzzyGraph=5.0, lmda=0.01, mu=0.1,
                 computeMST=True, intrinsicOptimization=True,
                 numberIterations=50, intrinsicLearningRate=0.05):
        # torch.rand -> uniform [0, 1)
        self.y = jax.random.uniform(key, (number_of_nodes, dimension), jnp.float32)
        self.A = jnp.eye(number_of_nodes, dtype=jnp.float32)
        self.alpha_k = float(alphaKmeans)
        self.alpha_fg = float(alphaFuzzyGraph)
        self.lmda = float(lmda)
        self.mu = float(mu)
        self.do_mst = computeMST
        self.do_intrinsic = intrinsicOptimization
        self.num_iter = int(numberIterations)
        self.lr = float(intrinsicLearningRate)

    def forward(self, X):
        # TODO(synk): computeMaxSpanningTreesBatch (MST step) is an external dependency
        # with no provided implementation; it is skipped (A stays the fuzzy graph).
        # TODO(synk): A is treated as a constant buffer during the Adam loop (no
        # gradient flows y -> A -> loss, unlike torch's retained autograd graph).
        num_iter = self.num_iter if self.do_intrinsic else 0
        y_new, a_new, loss = fuzzy_elpigraph_forward(
            X, self.y,
            alpha_k=self.alpha_k, alpha_fg=self.alpha_fg,
            lmda=self.lmda, mu=self.mu, lr=self.lr, num_iter=num_iter)
        self.y = y_new
        self.A = a_new
        return self.y, loss

    __call__ = forward


# ----------------------------------------------------------------------------
if __name__ == "__main__":
    key = jax.random.PRNGKey(0)
    kx, ky = jax.random.split(key)

    N, D, K = 64, 8, 16                     # data points, dimension, number_of_nodes
    X = jax.random.normal(kx, (N, D), jnp.float32)

    model = FuzzyElpiGraph(dimension=D, number_of_nodes=K, key=ky,
                           computeMST=True, intrinsicOptimization=True,
                           numberIterations=50)

    y_out, loss = model(X)
    jax.block_until_ready((y_out, loss))

    assert y_out.shape == (K, D)
    assert model.A.shape == (K, K)
    assert loss.shape == ()
    assert bool(jnp.all(jnp.isfinite(y_out)))
    assert bool(jnp.isfinite(loss))
    print("KERNEL_OK")
</pallas_src>

<mosaic_0001>
module attributes {stable_mosaic.version = 11 : i64} {
  func.func @_fused_elpigraph_kernel(%arg0: memref<64x8xf32, #tpu.memory_space<vmem>>, %arg1: memref<16x8xf32, #tpu.memory_space<vmem>>, %arg2: memref<50xf32, #tpu.memory_space<smem>>, %arg3: memref<50xf32, #tpu.memory_space<smem>>, %arg4: memref<16x8xf32, #tpu.memory_space<vmem>>, %arg5: memref<16x16xf32, #tpu.memory_space<vmem>>, %arg6: memref<1x1xf32, #tpu.memory_space<smem>>, %arg7: memref<16x8xf32, #tpu.memory_space<vmem>>, %arg8: memref<16x8xf32, #tpu.memory_space<vmem>>, %arg9: memref<16x8xf32, #tpu.memory_space<vmem>>) attributes {dimension_semantics = [], scalar_prefetch = 0 : i64, scratch_operands = 3 : i64, tpu.core_type = #tpu.core_type<tc>} {
    %c0 = arith.constant 0 : index
    %c0_0 = arith.constant 0 : index
    %0 = vector.load %arg0[%c0, %c0_0] : memref<64x8xf32, #tpu.memory_space<vmem>>, vector<64x8xf32>
    %c0_1 = arith.constant 0 : index
    %c0_2 = arith.constant 0 : index
    %1 = vector.load %arg1[%c0_1, %c0_2] : memref<16x8xf32, #tpu.memory_space<vmem>>, vector<16x8xf32>
    %cst = arith.constant dense<0.000000e+00> : vector<16x16xf32>
    %2 = tpu.matmul %1, %1, %cst {dimension_numbers = #tpu.dot_dimension_numbers<[1], [1], [0], [0], [0, 0, 1, 0], [], []>} : vector<16x8xf32>, vector<16x8xf32>, vector<16x16xf32> -> vector<16x16xf32>
    %3 = arith.mulf %1, %1 : vector<16x8xf32>
    %cst_3 = arith.constant dense<0.000000e+00> : vector<16xf32>
    %4 = vector.multi_reduction <add>, %3, %cst_3 [1] : vector<16x8xf32> to vector<16xf32>
    %5 = vector.shape_cast %4 : vector<16xf32> to vector<16x1xf32>
    %6 = vector.shape_cast %4 : vector<16xf32> to vector<1x16xf32>
    %7 = vector.broadcast %5 : vector<16x1xf32> to vector<16x16xf32>
    %8 = vector.broadcast %6 : vector<1x16xf32> to vector<16x16xf32>
    %9 = arith.addf %7, %8 : vector<16x16xf32>
    %cst_4 = arith.constant 2.000000e+00 : f32
    %10 = vector.broadcast %cst_4 : f32 to vector<16x16xf32>
    %11 = arith.mulf %10, %2 : vector<16x16xf32>
    %12 = arith.subf %9, %11 : vector<16x16xf32>
    %cst_5 = arith.constant 0.000000e+00 : f32
    %13 = vector.broadcast %cst_5 : f32 to vector<16x16xf32>
    %14 = arith.maximumf %12, %13 : vector<16x16xf32>
    %15 = tpu.iota {dimensions = array<i32: 0>} : vector<16x16xi32>
    %16 = tpu.iota {dimensions = array<i32: 1>} : vector<16x16xi32>
    %17 = arith.cmpi eq, %15, %16 : vector<16x16xi32>
    %cst_6 = arith.constant 1.000000e+02 : f32
    %18 = vector.broadcast %cst_6 : f32 to vector<16x16xf32>
    %19 = arith.select %17, %18, %14 : vector<16x16xi1>, vector<16x16xf32>
    %20 = vector.shape_cast %19 : vector<16x16xf32> to vector<1x16x16xf32>
    %cst_7 = arith.constant dense<0x7F800000> : vector<1xf32>
    %21 = vector.multi_reduction <minimumf>, %20, %cst_7 [1, 2] : vector<1x16x16xf32> to vector<1xf32>
    %22 = vector.shape_cast %21 : vector<1xf32> to vector<1x1x1xf32>
    %23 = vector.extract %22[0, 0, 0] : f32 from vector<1x1x1xf32>
    %24 = vector.broadcast %23 : f32 to vector<16x16xf32>
    %25 = arith.addf %19, %24 : vector<16x16xf32>
    %cst_8 = arith.constant 0.000000e+00 : f32
    %cst_9 = arith.constant 1.000000e+01 : f32
    %26 = vector.broadcast %cst_8 : f32 to vector<16x16xf32>
    %27 = arith.maximumf %26, %25 : vector<16x16xf32>
    %28 = vector.broadcast %cst_9 : f32 to vector<16x16xf32>
    %29 = arith.minimumf %28, %27 : vector<16x16xf32>
    %cst_10 = arith.constant -5.000000e+00 : f32
    %30 = vector.broadcast %cst_10 : f32 to vector<16x16xf32>
    %31 = arith.mulf %30, %29 : vector<16x16xf32>
    %32 = math.exp %31 : vector<16x16xf32>
    %cst_11 = arith.constant dense<0.000000e+00> : vector<16xf32>
    %33 = vector.multi_reduction <add>, %32, %cst_11 [1] : vector<16x16xf32> to vector<16xf32>
    %34 = vector.shape_cast %33 : vector<16xf32> to vector<16x1xf32>
    %cst_12 = arith.constant dense<0.000000e+00> : vector<16xf32>
    %35 = vector.multi_reduction <add>, %32, %cst_12 [0] : vector<16x16xf32> to vector<16xf32>
    %36 = vector.shape_cast %35 : vector<16xf32> to vector<1x16xf32>
    %cst_13 = arith.constant 5.000000e-01 : f32
    %37 = vector.broadcast %cst_13 : f32 to vector<16x16xf32>
    %38 = arith.mulf %37, %32 : vector<16x16xf32>
    %cst_14 = arith.constant 1.000000e+00 : f32
    %39 = vector.broadcast %cst_14 : f32 to vector<16x1xf32>
    %40 = arith.divf %39, %34 : vector<16x1xf32>
    %cst_15 = arith.constant 1.000000e+00 : f32
    %41 = vector.broadcast %cst_15 : f32 to vector<1x16xf32>
    %42 = arith.divf %41, %36 : vector<1x16xf32>
    %43 = vector.broadcast %40 : vector<16x1xf32> to vector<16x16xf32>
    %44 = vector.broadcast %42 : vector<1x16xf32> to vector<16x16xf32>
    %45 = arith.addf %43, %44 : vector<16x16xf32>
    %46 = arith.mulf %38, %45 : vector<16x16xf32>
    %47 = arith.mulf %0, %0 : vector<64x8xf32>
    %cst_16 = arith.constant dense<0.000000e+00> : vector<64xf32>
    %48 = vector.multi_reduction <add>, %47, %cst_16 [1] : vector<64x8xf32> to vector<64xf32>
    %49 = vector.shape_cast %48 : vector<64xf32> to vector<1x64xf32>
    %50 = arith.cmpi ne, %15, %16 : vector<16x16xi32>
    %51 = arith.extui %50 : vector<16x16xi1> to vector<16x16xi32>
    %52 = arith.sitofp %51 : vector<16x16xi32> to vector<16x16xf32>
    %53 = arith.cmpi sgt, %16, %15 : vector<16x16xi32>
    %54 = arith.extui %53 : vector<16x16xi1> to vector<16x16xi32>
    %55 = arith.sitofp %54 : vector<16x16xi32> to vector<16x16xf32>
    %cst_17 = arith.constant dense<0.000000e+00> : vector<16xf32>
    %56 = vector.multi_reduction <add>, %46, %cst_17 [1] : vector<16x16xf32> to vector<16xf32>
    %57 = vector.shape_cast %56 : vector<16xf32> to vector<16x1xf32>
    %cst_18 = arith.constant 1.000000e+00 : f32
    %58 = vector.broadcast %cst_18 : f32 to vector<16x1xf32>
    %59 = arith.cmpf ogt, %57, %58 : vector<16x1xf32>
    %60 = arith.extui %59 : vector<16x1xi1> to vector<16x1xi32>
    %61 = arith.sitofp %60 : vector<16x1xi32> to vector<16x1xf32>
    %62 = arith.mulf %46, %52 : vector<16x16xf32>
    %cst_19 = arith.constant dense<0.000000e+00> : vector<16xf32>
    %63 = vector.multi_reduction <add>, %62, %cst_19 [1] : vector<16x16xf32> to vector<16xf32>
    %64 = vector.shape_cast %63 : vector<16xf32> to vector<16x1xf32>
    %c0_20 = arith.constant 0 : index
    %c0_21 = arith.constant 0 : index
    %65 = vector.load %arg7[%c0_20, %c0_21] : memref<16x8xf32, #tpu.memory_space<vmem>>, vector<16x8xf32>
    tpu.vector_store %arg7[%c0_20, %c0_21], %1 {strides = array<i32>} : memref<16x8xf32, #tpu.memory_space<vmem>>, vector<16x8xf32>,
    %cst_22 = arith.constant 0.000000e+00 : f32
    %66 = vector.broadcast %cst_22 : f32 to vector<16x8xf32>
    %c0_23 = arith.constant 0 : index
    %c0_24 = arith.constant 0 : index
    %67 = vector.load %arg8[%c0_23, %c0_24] : memref<16x8xf32, #tpu.memory_space<vmem>>, vector<16x8xf32>
    tpu.vector_store %arg8[%c0_23, %c0_24], %66 {strides = array<i32>} : memref<16x8xf32, #tpu.memory_space<vmem>>, vector<16x8xf32>,
    %cst_25 = arith.constant 0.000000e+00 : f32
    %68 = vector.broadcast %cst_25 : f32 to vector<16x8xf32>
    %c0_26 = arith.constant 0 : index
    %c0_27 = arith.constant 0 : index
    %69 = vector.load %arg9[%c0_26, %c0_27] : memref<16x8xf32, #tpu.memory_space<vmem>>, vector<16x8xf32>
    tpu.vector_store %arg9[%c0_26, %c0_27], %68 {strides = array<i32>} : memref<16x8xf32, #tpu.memory_space<vmem>>, vector<16x8xf32>,
    %c0_i32 = arith.constant 0 : i32
    %c50_i32 = arith.constant 50 : i32
    %70 = arith.addi %c0_i32, %c50_i32 : i32
    %c1_i32 = arith.constant 1 : i32
    scf.for %arg10 = %c0_i32 to %70 step %c1_i32  : i32 {
      %c0_62 = arith.constant 0 : index
      %c0_63 = arith.constant 0 : index
      %156 = vector.load %arg7[%c0_62, %c0_63] : memref<16x8xf32, #tpu.memory_space<vmem>>, vector<16x8xf32>
      %157 = arith.mulf %156, %156 : vector<16x8xf32>
      %cst_64 = arith.constant dense<0.000000e+00> : vector<16xf32>
      %158 = vector.multi_reduction <add>, %157, %cst_64 [1] : vector<16x8xf32> to vector<16xf32>
      %159 = vector.shape_cast %158 : vector<16xf32> to vector<16x1xf32>
      %cst_65 = arith.constant dense<0.000000e+00> : vector<16x64xf32>
      %160 = tpu.matmul %156, %0, %cst_65 {dimension_numbers = #tpu.dot_dimension_numbers<[1], [1], [0], [0], [0, 0, 1, 0], [], []>} : vector<16x8xf32>, vector<64x8xf32>, vector<16x64xf32> -> vector<16x64xf32>
      %161 = vector.broadcast %159 : vector<16x1xf32> to vector<16x64xf32>
      %162 = vector.broadcast %49 : vector<1x64xf32> to vector<16x64xf32>
      %163 = arith.addf %161, %162 : vector<16x64xf32>
      %cst_66 = arith.constant 2.000000e+00 : f32
      %164 = vector.broadcast %cst_66 : f32 to vector<16x64xf32>
      %165 = arith.mulf %164, %160 : vector<16x64xf32>
      %166 = arith.subf %163, %165 : vector<16x64xf32>
      %cst_67 = arith.constant 0.000000e+00 : f32
      %167 = vector.broadcast %cst_67 : f32 to vector<16x64xf32>
      %168 = arith.maximumf %166, %167 : vector<16x64xf32>
      %169 = vector.shape_cast %168 : vector<16x64xf32> to vector<1x16x64xf32>
      %cst_68 = arith.constant dense<0x7F800000> : vector<1xf32>
      %170 = vector.multi_reduction <minimumf>, %169, %cst_68 [1, 2] : vector<1x16x64xf32> to vector<1xf32>
      %171 = vector.shape_cast %170 : vector<1xf32> to vector<1x1x1xf32>
      %172 = vector.extract %171[0, 0, 0] : f32 from vector<1x1x1xf32>
      %173 = vector.broadcast %172 : f32 to vector<16x64xf32>
      %174 = arith.addf %168, %173 : vector<16x64xf32>
      %cst_69 = arith.constant 0.000000e+00 : f32
      %cst_70 = arith.constant 1.000000e+01 : f32
      %175 = vector.broadcast %cst_69 : f32 to vector<16x64xf32>
      %176 = arith.maximumf %175, %174 : vector<16x64xf32>
      %177 = vector.broadcast %cst_70 : f32 to vector<16x64xf32>
      %178 = arith.minimumf %177, %176 : vector<16x64xf32>
      %cst_71 = arith.constant dense<0x7F800000> : vector<64xf32>
      %179 = vector.multi_reduction <minimumf>, %178, %cst_71 [0] : vector<16x64xf32> to vector<64xf32>
      %180 = vector.shape_cast %179 : vector<64xf32> to vector<1x64xf32>
      %181 = vector.broadcast %180 : vector<1x64xf32> to vector<16x64xf32>
      %182 = arith.subf %178, %181 : vector<16x64xf32>
      %cst_72 = arith.constant -5.000000e+00 : f32
      %183 = vector.broadcast %cst_72 : f32 to vector<16x64xf32>
      %184 = arith.mulf %183, %182 : vector<16x64xf32>
      %185 = math.exp %184 : vector<16x64xf32>
      %cst_73 = arith.constant dense<0.000000e+00> : vector<64xf32>
      %186 = vector.multi_reduction <add>, %185, %cst_73 [0] : vector<16x64xf32> to vector<64xf32>
      %187 = vector.shape_cast %186 : vector<64xf32> to vector<1x64xf32>
      %188 = vector.broadcast %187 : vector<1x64xf32> to vector<16x64xf32>
      %189 = arith.divf %185, %188 : vector<16x64xf32>
      %190 = arith.mulf %168, %189 : vector<16x64xf32>
      %cst_74 = arith.constant dense<0.000000e+00> : vector<64xf32>
      %191 = vector.multi_reduction <add>, %190, %cst_74 [0] : vector<16x64xf32> to vector<64xf32>
      %192 = vector.shape_cast %191 : vector<64xf32> to vector<1x64xf32>
      %cst_75 = arith.constant dense<0.000000e+00> : vector<16x8xf32>
      %193 = tpu.matmul %46, %156, %cst_75 {dimension_numbers = #tpu.dot_dimension_numbers<[1], [0], [0], [1], [0, 0, 1, 1], [], []>} : vector<16x16xf32>, vector<16x8xf32>, vector<16x8xf32> -> vector<16x8xf32>
      %cst_76 = arith.constant 1.000000e+00 : f32
      %194 = vector.broadcast %cst_76 : f32 to vector<16x1xf32>
      %195 = arith.cmpf ogt, %57, %194 : vector<16x1xf32>
      %196 = vector.broadcast %57 : vector<16x1xf32> to vector<16x8xf32>
      %197 = arith.divf %193, %196 : vector<16x8xf32>
      %cst_77 = arith.constant 0.000000e+00 : f32
      %198 = vector.shape_cast %195 : vector<16x1xi1> to vector<16x1xi1>
      %199 = vector.broadcast %198 : vector<16x1xi1> to vector<16x8xi1>
      %200 = vector.broadcast %cst_77 : f32 to vector<16x8xf32>
      %201 = arith.select %199, %197, %200 : vector<16x8xi1>, vector<16x8xf32>
      %202 = arith.subf %156, %201 : vector<16x8xf32>
      %cst_78 = arith.constant 1.000000e+01 : f32
      %203 = vector.broadcast %cst_78 : f32 to vector<16x64xf32>
      %204 = arith.cmpf olt, %174, %203 : vector<16x64xf32>
      %205 = arith.extui %204 : vector<16x64xi1> to vector<16x64xi32>
      %206 = arith.sitofp %205 : vector<16x64xi32> to vector<16x64xf32>
      %cst_79 = arith.constant -7.812500e-02 : f32
      %207 = vector.broadcast %cst_79 : f32 to vector<16x64xf32>
      %208 = arith.mulf %207, %189 : vector<16x64xf32>
      %209 = vector.broadcast %192 : vector<1x64xf32> to vector<16x64xf32>
      %210 = arith.subf %168, %209 : vector<16x64xf32>
      %211 = arith.mulf %208, %210 : vector<16x64xf32>
      %212 = arith.mulf %211, %206 : vector<16x64xf32>
      %213 = vector.shape_cast %212 : vector<16x64xf32> to vector<1x16x64xf32>
      %cst_80 = arith.constant dense<0.000000e+00> : vector<1xf32>
      %214 = vector.multi_reduction <add>, %213, %cst_80 [1, 2] : vector<1x16x64xf32> to vector<1xf32>
      %215 = vector.shape_cast %214 : vector<1xf32> to vector<1x1x1xf32>
      %216 = vector.extract %215[0, 0, 0] : f32 from vector<1x1x1xf32>
      %217 = vector.broadcast %172 : f32 to vector<16x64xf32>
      %218 = arith.cmpf oeq, %168, %217 : vector<16x64xf32>
      %219 = arith.extui %218 : vector<16x64xi1> to vector<16x64xi32>
      %220 = arith.sitofp %219 : vector<16x64xi32> to vector<16x64xf32>
      %221 = vector.shape_cast %220 : vector<16x64xf32> to vector<1x16x64xf32>
      %cst_81 = arith.constant dense<0.000000e+00> : vector<1xf32>
      %222 = vector.multi_reduction <add>, %221, %cst_81 [1, 2] : vector<1x16x64xf32> to vector<1xf32>
      %223 = vector.shape_cast %222 : vector<1xf32> to vector<1x1x1xf32>
      %224 = vector.extract %223[0, 0, 0] : f32 from vector<1x1x1xf32>
      %225 = vector.broadcast %224 : f32 to vector<16x64xf32>
      %226 = arith.divf %220, %225 : vector<16x64xf32>
      %cst_82 = arith.constant 1.562500e-02 : f32
      %227 = vector.broadcast %cst_82 : f32 to vector<16x64xf32>
      %228 = arith.mulf %189, %227 : vector<16x64xf32>
      %229 = arith.addf %228, %212 : vector<16x64xf32>
      %230 = vector.broadcast %216 : f32 to vector<16x64xf32>
      %231 = arith.mulf %230, %226 : vector<16x64xf32>
      %232 = arith.addf %229, %231 : vector<16x64xf32>
      %cst_83 = arith.constant 0.000000e+00 : f32
      %233 = vector.broadcast %cst_83 : f32 to vector<16x64xf32>
      %234 = arith.cmpf ogt, %166, %233 : vector<16x64xf32>
      %235 = arith.extui %234 : vector<16x64xi1> to vector<16x64xi32>
      %236 = arith.sitofp %235 : vector<16x64xi32> to vector<16x64xf32>
      %237 = arith.mulf %232, %236 : vector<16x64xf32>
      %cst_84 = arith.constant dense<0.000000e+00> : vector<16xf32>
      %238 = vector.multi_reduction <add>, %237, %cst_84 [1] : vector<16x64xf32> to vector<16xf32>
      %239 = vector.shape_cast %238 : vector<16xf32> to vector<16x1xf32>
      %cst_85 = arith.constant dense<0.000000e+00> : vector<16x8xf32>
      %240 = tpu.matmul %237, %0, %cst_85 {dimension_numbers = #tpu.dot_dimension_numbers<[1], [0], [0], [1], [0, 0, 1, 1], [], []>} : vector<16x64xf32>, vector<64x8xf32>, vector<16x8xf32> -> vector<16x8xf32>
      %241 = vector.broadcast %239 : vector<16x1xf32> to vector<16x8xf32>
      %242 = arith.mulf %241, %156 : vector<16x8xf32>
      %243 = arith.subf %242, %240 : vector<16x8xf32>
      %cst_86 = arith.constant 2.000000e+00 : f32
      %244 = vector.broadcast %cst_86 : f32 to vector<16x8xf32>
      %245 = arith.mulf %244, %243 : vector<16x8xf32>
      %cst_87 = arith.constant dense<0.000000e+00> : vector<16x8xf32>
      %246 = tpu.matmul %62, %156, %cst_87 {dimension_numbers = #tpu.dot_dimension_numbers<[1], [0], [0], [1], [0, 0, 1, 1], [], []>} : vector<16x16xf32>, vector<16x8xf32>, vector<16x8xf32> -> vector<16x8xf32>
      %247 = vector.broadcast %64 : vector<16x1xf32> to vector<16x8xf32>
      %248 = arith.mulf %247, %156 : vector<16x8xf32>
      %249 = arith.subf %248, %246 : vector<16x8xf32>
      %cst_88 = arith.constant 2.000000e+00 : f32
      %250 = vector.broadcast %cst_88 : f32 to vector<16x8xf32>
      %251 = arith.mulf %250, %249 : vector<16x8xf32>
      %cst_89 = arith.constant 2.000000e+00 : f32
      %252 = vector.broadcast %cst_89 : f32 to vector<16x1xf32>
      %253 = arith.mulf %252, %61 : vector<16x1xf32>
      %254 = vector.broadcast %253 : vector<16x1xf32> to vector<16x8xf32>
      %255 = arith.mulf %254, %202 : vector<16x8xf32>
      %cst_90 = arith.constant 1.000000e+00 : f32
      %256 = vector.broadcast %cst_90 : f32 to vector<16x1xf32>
      %257 = arith.cmpf ogt, %57, %256 : vector<16x1xf32>
      %258 = vector.broadcast %57 : vector<16x1xf32> to vector<16x8xf32>
      %259 = arith.divf %255, %258 : vector<16x8xf32>
      %cst_91 = arith.constant 0.000000e+00 : f32
      %260 = vector.shape_cast %257 : vector<16x1xi1> to vector<16x1xi1>
      %261 = vector.broadcast %260 : vector<16x1xi1> to vector<16x8xi1>
      %262 = vector.broadcast %cst_91 : f32 to vector<16x8xf32>
      %263 = arith.select %261, %259, %262 : vector<16x8xi1>, vector<16x8xf32>
      %cst_92 = arith.constant dense<0.000000e+00> : vector<16x8xf32>
      %264 = tpu.matmul %46, %263, %cst_92 {dimension_numbers = #tpu.dot_dimension_numbers<[1], [0], [0], [1], [0, 0, 1, 1], [], []>} : vector<16x16xf32>, vector<16x8xf32>, vector<16x8xf32> -> vector<16x8xf32>
      %265 = arith.subf %255, %264 : vector<16x8xf32>
      %cst_93 = arith.constant 0.00999999977 : f32
      %266 = vector.broadcast %cst_93 : f32 to vector<16x8xf32>
      %267 = arith.mulf %266, %251 : vector<16x8xf32>
      %268 = arith.addf %245, %267 : vector<16x8xf32>
      %cst_94 = arith.constant 1.000000e-01 : f32
      %269 = vector.broadcast %cst_94 : f32 to vector<16x8xf32>
      %270 = arith.mulf %269, %265 : vector<16x8xf32>
      %271 = arith.addf %268, %270 : vector<16x8xf32>
      %c0_95 = arith.constant 0 : index
      %c0_96 = arith.constant 0 : index
      %272 = vector.load %arg8[%c0_95, %c0_96] : memref<16x8xf32, #tpu.memory_space<vmem>>, vector<16x8xf32>
      %cst_97 = arith.constant 0.899999976 : f32
      %273 = vector.broadcast %cst_97 : f32 to vector<16x8xf32>
      %274 = arith.mulf %273, %272 : vector<16x8xf32>
      %cst_98 = arith.constant 1.000000e-01 : f32
      %275 = vector.broadcast %cst_98 : f32 to vector<16x8xf32>
      %276 = arith.mulf %275, %271 : vector<16x8xf32>
      %277 = arith.addf %274, %276 : vector<16x8xf32>
      %c0_99 = arith.constant 0 : index
      %c0_100 = arith.constant 0 : index
      %278 = vector.load %arg9[%c0_99, %c0_100] : memref<16x8xf32, #tpu.memory_space<vmem>>, vector<16x8xf32>
      %cst_101 = arith.constant 9.990000e-01 : f32
      %279 = vector.broadcast %cst_101 : f32 to vector<16x8xf32>
      %280 = arith.mulf %279, %278 : vector<16x8xf32>
      %281 = arith.mulf %271, %271 : vector<16x8xf32>
      %cst_102 = arith.constant 1.000000e-03 : f32
      %282 = vector.broadcast %cst_102 : f32 to vector<16x8xf32>
      %283 = arith.mulf %282, %281 : vector<16x8xf32>
      %284 = arith.addf %280, %283 : vector<16x8xf32>
      %c0_103 = arith.constant 0 : index
      %c0_104 = arith.constant 0 : index
      %285 = vector.load %arg8[%c0_103, %c0_104] : memref<16x8xf32, #tpu.memory_space<vmem>>, vector<16x8xf32>
      tpu.vector_store %arg8[%c0_103, %c0_104], %277 {strides = array<i32>} : memref<16x8xf32, #tpu.memory_space<vmem>>, vector<16x8xf32>,
      %c0_105 = arith.constant 0 : index
      %c0_106 = arith.constant 0 : index
      %286 = vector.load %arg9[%c0_105, %c0_106] : memref<16x8xf32, #tpu.memory_space<vmem>>, vector<16x8xf32>
      tpu.vector_store %arg9[%c0_105, %c0_106], %284 {strides = array<i32>} : memref<16x8xf32, #tpu.memory_space<vmem>>, vector<16x8xf32>,
      %287 = math.sqrt %284 : vector<16x8xf32>
      %288 = arith.index_cast %arg10 : i32 to index
      %289 = memref.load %arg3[%288] : memref<50xf32, #tpu.memory_space<smem>>
      %290 = vector.broadcast %289 : f32 to vector<16x8xf32>
      %291 = arith.mulf %287, %290 : vector<16x8xf32>
      %cst_107 = arith.constant 9.99999993E-9 : f32
      %292 = vector.broadcast %cst_107 : f32 to vector<16x8xf32>
      %293 = arith.addf %291, %292 : vector<16x8xf32>
      %294 = arith.index_cast %arg10 : i32 to index
      %295 = memref.load %arg2[%294] : memref<50xf32, #tpu.memory_space<smem>>
      %296 = arith.divf %277, %293 : vector<16x8xf32>
      %297 = vector.broadcast %295 : f32 to vector<16x8xf32>
      %298 = arith.mulf %297, %296 : vector<16x8xf32>
      %299 = arith.subf %156, %298 : vector<16x8xf32>
      %c0_108 = arith.constant 0 : index
      %c0_109 = arith.constant 0 : index
      %300 = vector.load %arg7[%c0_108, %c0_109] : memref<16x8xf32, #tpu.memory_space<vmem>>, vector<16x8xf32>
      tpu.vector_store %arg7[%c0_108, %c0_109], %299 {strides = array<i32>} : memref<16x8xf32, #tpu.memory_space<vmem>>, vector<16x8xf32>,
    }
    %c50_i32_28 = arith.constant 50 : i32
    %c0_29 = arith.constant 0 : index
    %c0_30 = arith.constant 0 : index
    %71 = vector.load %arg7[%c0_29, %c0_30] : memref<16x8xf32, #tpu.memory_space<vmem>>, vector<16x8xf32>
    %72 = arith.mulf %71, %71 : vector<16x8xf32>
    %cst_31 = arith.constant dense<0.000000e+00> : vector<16xf32>
    %73 = vector.multi_reduction <add>, %72, %cst_31 [1] : vector<16x8xf32> to vector<16xf32>
    %74 = vector.shape_cast %73 : vector<16xf32> to vector<16x1xf32>
    %cst_32 = arith.constant dense<0.000000e+00> : vector<16x64xf32>
    %75 = tpu.matmul %71, %0, %cst_32 {dimension_numbers = #tpu.dot_dimension_numbers<[1], [1], [0], [0], [0, 0, 1, 0], [], []>} : vector<16x8xf32>, vector<64x8xf32>, vector<16x64xf32> -> vector<16x64xf32>
    %76 = vector.broadcast %74 : vector<16x1xf32> to vector<16x64xf32>
    %77 = vector.broadcast %49 : vector<1x64xf32> to vector<16x64xf32>
    %78 = arith.addf %76, %77 : vector<16x64xf32>
    %cst_33 = arith.constant 2.000000e+00 : f32
    %79 = vector.broadcast %cst_33 : f32 to vector<16x64xf32>
    %80 = arith.mulf %79, %75 : vector<16x64xf32>
    %81 = arith.subf %78, %80 : vector<16x64xf32>
    %cst_34 = arith.constant 0.000000e+00 : f32
    %82 = vector.broadcast %cst_34 : f32 to vector<16x64xf32>
    %83 = arith.maximumf %81, %82 : vector<16x64xf32>
    %84 = vector.shape_cast %83 : vector<16x64xf32> to vector<1x16x64xf32>
    %cst_35 = arith.constant dense<0x7F800000> : vector<1xf32>
    %85 = vector.multi_reduction <minimumf>, %84, %cst_35 [1, 2] : vector<1x16x64xf32> to vector<1xf32>
    %86 = vector.shape_cast %85 : vector<1xf32> to vector<1x1x1xf32>
    %87 = vector.extract %86[0, 0, 0] : f32 from vector<1x1x1xf32>
    %88 = vector.broadcast %87 : f32 to vector<16x64xf32>
    %89 = arith.addf %83, %88 : vector<16x64xf32>
    %cst_36 = arith.constant 0.000000e+00 : f32
    %cst_37 = arith.constant 1.000000e+01 : f32
    %90 = vector.broadcast %cst_36 : f32 to vector<16x64xf32>
    %91 = arith.maximumf %90, %89 : vector<16x64xf32>
    %92 = vector.broadcast %cst_37 : f32 to vector<16x64xf32>
    %93 = arith.minimumf %92, %91 : vector<16x64xf32>
    %cst_38 = arith.constant dense<0x7F800000> : vector<64xf32>
    %94 = vector.multi_reduction <minimumf>, %93, %cst_38 [0] : vector<16x64xf32> to vector<64xf32>
    %95 = vector.shape_cast %94 : vector<64xf32> to vector<1x64xf32>
    %96 = vector.broadcast %95 : vector<1x64xf32> to vector<16x64xf32>
    %97 = arith.subf %93, %96 : vector<16x64xf32>
    %cst_39 = arith.constant -5.000000e+00 : f32
    %98 = vector.broadcast %cst_39 : f32 to vector<16x64xf32>
    %99 = arith.mulf %98, %97 : vector<16x64xf32>
    %100 = math.exp %99 : vector<16x64xf32>
    %cst_40 = arith.constant dense<0.000000e+00> : vector<64xf32>
    %101 = vector.multi_reduction <add>, %100, %cst_40 [0] : vector<16x64xf32> to vector<64xf32>
    %102 = vector.shape_cast %101 : vector<64xf32> to vector<1x64xf32>
    %103 = vector.broadcast %102 : vector<1x64xf32> to vector<16x64xf32>
    %104 = arith.divf %100, %103 : vector<16x64xf32>
    %105 = arith.mulf %83, %104 : vector<16x64xf32>
    %cst_41 = arith.constant dense<0.000000e+00> : vector<64xf32>
    %106 = vector.multi_reduction <add>, %105, %cst_41 [0] : vector<16x64xf32> to vector<64xf32>
    %107 = vector.shape_cast %106 : vector<64xf32> to vector<1x64xf32>
    %cst_42 = arith.constant dense<0.000000e+00> : vector<16x8xf32>
    %108 = tpu.matmul %46, %71, %cst_42 {dimension_numbers = #tpu.dot_dimension_numbers<[1], [0], [0], [1], [0, 0, 1, 1], [], []>} : vector<16x16xf32>, vector<16x8xf32>, vector<16x8xf32> -> vector<16x8xf32>
    %cst_43 = arith.constant 1.000000e+00 : f32
    %109 = vector.broadcast %cst_43 : f32 to vector<16x1xf32>
    %110 = arith.cmpf ogt, %57, %109 : vector<16x1xf32>
    %111 = vector.broadcast %57 : vector<16x1xf32> to vector<16x8xf32>
    %112 = arith.divf %108, %111 : vector<16x8xf32>
    %cst_44 = arith.constant 0.000000e+00 : f32
    %113 = vector.shape_cast %110 : vector<16x1xi1> to vector<16x1xi1>
    %114 = vector.broadcast %113 : vector<16x1xi1> to vector<16x8xi1>
    %115 = vector.broadcast %cst_44 : f32 to vector<16x8xf32>
    %116 = arith.select %114, %112, %115 : vector<16x8xi1>, vector<16x8xf32>
    %117 = arith.subf %71, %116 : vector<16x8xf32>
    %118 = vector.shape_cast %107 : vector<1x64xf32> to vector<1x1x64xf32>
    %cst_45 = arith.constant dense<0.000000e+00> : vector<1xf32>
    %119 = vector.multi_reduction <add>, %118, %cst_45 [1, 2] : vector<1x1x64xf32> to vector<1xf32>
    %120 = vector.shape_cast %119 : vector<1xf32> to vector<1x1x1xf32>
    %121 = vector.extract %120[0, 0, 0] : f32 from vector<1x1x1xf32>
    %cst_46 = arith.constant 1.562500e-02 : f32
    %122 = arith.mulf %121, %cst_46 : f32
    %cst_47 = arith.constant dense<0.000000e+00> : vector<16x16xf32>
    %123 = tpu.matmul %71, %71, %cst_47 {dimension_numbers = #tpu.dot_dimension_numbers<[1], [1], [0], [0], [0, 0, 1, 0], [], []>} : vector<16x8xf32>, vector<16x8xf32>, vector<16x16xf32> -> vector<16x16xf32>
    %124 = arith.mulf %71, %71 : vector<16x8xf32>
    %cst_48 = arith.constant dense<0.000000e+00> : vector<16xf32>
    %125 = vector.multi_reduction <add>, %124, %cst_48 [1] : vector<16x8xf32> to vector<16xf32>
    %126 = vector.shape_cast %125 : vector<16xf32> to vector<1x16xf32>
    %127 = vector.broadcast %74 : vector<16x1xf32> to vector<16x16xf32>
    %128 = vector.broadcast %126 : vector<1x16xf32> to vector<16x16xf32>
    %129 = arith.addf %127, %128 : vector<16x16xf32>
    %cst_49 = arith.constant 2.000000e+00 : f32
    %130 = vector.broadcast %cst_49 : f32 to vector<16x16xf32>
    %131 = arith.mulf %130, %123 : vector<16x16xf32>
    %132 = arith.subf %129, %131 : vector<16x16xf32>
    %cst_50 = arith.constant 0.000000e+00 : f32
    %133 = vector.broadcast %cst_50 : f32 to vector<16x16xf32>
    %134 = arith.maximumf %132, %133 : vector<16x16xf32>
    %135 = arith.mulf %134, %46 : vector<16x16xf32>
    %136 = arith.mulf %135, %55 : vector<16x16xf32>
    %137 = vector.shape_cast %136 : vector<16x16xf32> to vector<1x16x16xf32>
    %cst_51 = arith.constant dense<0.000000e+00> : vector<1xf32>
    %138 = vector.multi_reduction <add>, %137, %cst_51 [1, 2] : vector<1x16x16xf32> to vector<1xf32>
    %139 = vector.shape_cast %138 : vector<1xf32> to vector<1x1x1xf32>
    %140 = vector.extract %139[0, 0, 0] : f32 from vector<1x1x1xf32>
    %141 = arith.mulf %117, %117 : vector<16x8xf32>
    %cst_52 = arith.constant dense<0.000000e+00> : vector<16xf32>
    %142 = vector.multi_reduction <add>, %141, %cst_52 [1] : vector<16x8xf32> to vector<16xf32>
    %143 = vector.shape_cast %142 : vector<16xf32> to vector<16x1xf32>
    %144 = arith.mulf %143, %61 : vector<16x1xf32>
    %145 = vector.shape_cast %144 : vector<16x1xf32> to vector<1x16x1xf32>
    %cst_53 = arith.constant dense<0.000000e+00> : vector<1xf32>
    %146 = vector.multi_reduction <add>, %145, %cst_53 [1, 2] : vector<1x16x1xf32> to vector<1xf32>
    %147 = vector.shape_cast %146 : vector<1xf32> to vector<1x1x1xf32>
    %148 = vector.extract %147[0, 0, 0] : f32 from vector<1x1x1xf32>
    %cst_54 = arith.constant 0.00999999977 : f32
    %149 = arith.mulf %cst_54, %140 : f32
    %150 = arith.addf %122, %149 : f32
    %cst_55 = arith.constant 1.000000e-01 : f32
    %151 = arith.mulf %cst_55, %148 : f32
    %152 = arith.addf %150, %151 : f32
    %c0_56 = arith.constant 0 : index
    %c0_57 = arith.constant 0 : index
    %153 = vector.load %arg4[%c0_56, %c0_57] : memref<16x8xf32, #tpu.memory_space<vmem>>, vector<16x8xf32>
    tpu.vector_store %arg4[%c0_56, %c0_57], %71 {strides = array<i32>} : memref<16x8xf32, #tpu.memory_space<vmem>>, vector<16x8xf32>,
    %c0_58 = arith.constant 0 : index
    %c0_59 = arith.constant 0 : index
    %154 = vector.load %arg5[%c0_58, %c0_59] : memref<16x16xf32, #tpu.memory_space<vmem>>, vector<16x16xf32>
    tpu.vector_store %arg5[%c0_58, %c0_59], %46 {strides = array<i32>} : memref<16x16xf32, #tpu.memory_space<vmem>>, vector<16x16xf32>,
    %c0_60 = arith.constant 0 : index
    %c0_61 = arith.constant 0 : index
    %155 = memref.load %arg6[%c0_60, %c0_61] : memref<1x1xf32, #tpu.memory_space<smem>>
    memref.store %152, %arg6[%c0_60, %c0_61] : memref<1x1xf32, #tpu.memory_space<smem>>
    return
  }
}

</mosaic_0001>

<llo_original>
// kernel: fuzzy_elpigraph_forward.1
$region0: #{fuzzy_elpigraph_forward.1}
  #allocation0 [shape = 'u32[]', space=smem, size = 0x4, offset = 0x4, fixed_abs, tag = 'smem constant byte address 0x4 - core index']
  #allocation1 [shape = 'u32[144,128]{1,0:T(1,128)}', space=vmem, size = 0x12000, scoped, tag = 'internal scratch']
  #allocation2 [shape = 'f32[16,8]{1,0:T(8,128)}', space=vmem, size = 0x2000, scoped, tag = 'scratch operand']
  #allocation3 [shape = 'f32[16,8]{1,0:T(8,128)}', space=vmem, size = 0x2000, scoped, tag = 'scratch operand']
  #allocation4 [shape = 'f32[16,8]{1,0:T(8,128)}', space=vmem, size = 0x2000, scoped, tag = 'scratch operand']
  %s0 = inlined_call_operand.vmem [shape: f32[64,8], index: 0, kind: input, shape index: {}]
  %s1 = inlined_call_operand.vmem [shape: f32[16,8], index: 1, kind: input, shape index: {}]
  %s2 = inlined_call_operand.vmem [shape: f32[50], index: 2, kind: input, shape index: {}]
  %s3 = inlined_call_operand.vmem [shape: f32[50], index: 3, kind: input, shape index: {}]
  %s4 = inlined_call_operand.vmem [shape: f32[16,8], index: 4, kind: output, shape index: {0}]
  %s5 = inlined_call_operand.hbm [shape: f32[16,16], index: 5, kind: output, shape index: {1}]
  %s6 = inlined_call_operand.hbm [shape: f32[1,1], index: 6, kind: output, shape index: {2}]
  %7 = xla_tuple %s4, %s5, %s6
  %s8 = sld [smem:[#allocation0]]
  $region57: #{fuzzy_elpigraph_forward.1} parent=0
    _
  %s10 = ssub.s32 1, %s8
  %s11 = scalar_select 0, %s10, %s8
  $region1: #{fuzzy_elpigraph_forward.1} parent=0
    #allocation5 [shape = 'u8[512]{0}', space=smem, size = 0x200, scoped, tag = 'input window, operand 2, single buffered']
    #allocation6 [shape = 's32[1]{0}', space=sflag, size = 0x4, scoped, tag = 'scoped memory for fuzzy_elpigraph_forward.1']
    #allocation7 [shape = 's32[1]{0}', space=sflag, size = 0x4, scoped, tag = 'scoped memory for fuzzy_elpigraph_forward.1']
    #allocation8 [shape = 's32[1]{0}', space=sflag, size = 0x4, scoped, tag = 'scoped memory for fuzzy_elpigraph_forward.1']
    #allocation9 [shape = 'u8[512]{0}', space=smem, size = 0x200, scoped, tag = 'input window, operand 3, single buffered']
    #allocation10 [shape = 's32[1]{0}', space=sflag, size = 0x4, scoped, tag = 'scoped memory for fuzzy_elpigraph_forward.1']
    #allocation11 [shape = 'u8[8192]{0}', space=vmem, size = 0x2000, scoped, tag = 'output window, operand 1, single buffered']
    #allocation12 [shape = 'u8[512]{0}', space=smem, size = 0x200, scoped, tag = 'output window, operand 2, single buffered']
    %12 = vsyncpa [#allocation8], 0
    %13 = vsyncpa [#allocation10], 0
    %14 = vsyncpa [#allocation6], 0
    %15 = vsyncpa [#allocation7], 0
    // Predicated region
    $region2: #{fuzzy_elpigraph_forward.1} parent=1 // pred_check
      _
    $region3: #{fuzzy_elpigraph_forward.1} parent=1 // pred_check_branch
      %17 = sbr.rel (0) target = $region5
    $region4: #{fuzzy_elpigraph_forward.1} parent=1 // pred_region
      _
    $region5: #{fuzzy_elpigraph_forward.1} parent=1 // pred_fallthru
      _
    // Predicated region
    $region6: #{fuzzy_elpigraph_forward.1} parent=1 // pred_check
      _
    $region7: #{fuzzy_elpigraph_forward.1} parent=1 // pred_check_branch
      %19 = sbr.rel (0) target = $region9
    $region8: #{fuzzy_elpigraph_forward.1} parent=1 // pred_region
      _
    $region9: #{fuzzy_elpigraph_forward.1} parent=1 // pred_fallthru
      _
    // Predicated region
    $region10: #{fuzzy_elpigraph_forward.1} parent=1 // pred_check
      _
    $region11: #{fuzzy_elpigraph_forward.1} parent=1 // pred_check_branch
      %21 = sbr.rel (0) target = $region13
    $region12: #{fuzzy_elpigraph_forward.1} parent=1 // pred_region
      %s23 = ssub.s32 16, 16
      %24 = vsyncadd [#allocation8], %s23
      %s26 = sshll.u32 %s2, 4
      %s27 = int_to_ptr.vmem [resolvable:$true] %s26
      %29 = dma.vmem_to_smem %s27, 16, [#allocation5], [#allocation8]
    $region13: #{fuzzy_elpigraph_forward.1} parent=1 // pred_fallthru
      _
    // Predicated region
    $region14: #{fuzzy_elpigraph_forward.1} parent=1 // pred_check
      _
    $region15: #{fuzzy_elpigraph_forward.1} parent=1 // pred_check_branch
      %31 = sbr.rel (0) target = $region17
    $region16: #{fuzzy_elpigraph_forward.1} parent=1 // pred_region
      %s33 = ssub.s32 16, 16
      %34 = vsyncadd [#allocation10], %s33
      %s36 = sshll.u32 %s3, 4
      %s37 = int_to_ptr.vmem [resolvable:$true] %s36
      %39 = dma.vmem_to_smem %s37, 16, [#allocation9], [#allocation10]
    $region17: #{fuzzy_elpigraph_forward.1} parent=1 // pred_fallthru
      _
    // Predicated region
    $region18: #{fuzzy_elpigraph_forward.1} parent=1 // pred_check
      _
    $region19: #{fuzzy_elpigraph_forward.1} parent=1 // pred_check_branch
      %41 = sbr.rel (0) target = $region21
    $region20: #{fuzzy_elpigraph_forward.1} parent=1 // pred_region
      %42 = dma.done [#allocation8], 16
    $region21: #{fuzzy_elpigraph_forward.1} parent=1 // pred_fallthru
      _
    // Predicated region
    $region22: #{fuzzy_elpigraph_forward.1} parent=1 // pred_check
      _
    $region23: #{fuzzy_elpigraph_forward.1} parent=1 // pred_check_branch
      %44 = sbr.rel (0) target = $region25
    $region24: #{fuzzy_elpigraph_forward.1} parent=1 // pred_region
      %45 = dma.done [#allocation10], 16
    $region25: #{fuzzy_elpigraph_forward.1} parent=1 // pred_fallthru
      _
    %46 = sfence
    %v47 = vld [vmem:[%s0] sm:$0xff]
    %v48 = vld [vmem:[%s0 + $0x8] sm:$0xff]
    %v49 = vld [vmem:[%s0 + $0x10] sm:$0xff]
    %v50 = vld [vmem:[%s0 + $0x18] sm:$0xff]
    %v51 = vld [vmem:[%s0 + $0x20] sm:$0xff]
    %v52 = vld [vmem:[%s0 + $0x28] sm:$0xff]
    %v53 = vld [vmem:[%s0 + $0x30] sm:$0xff]
    %v54 = vld [vmem:[%s0 + $0x38] sm:$0xff]
    %v55 = vld [vmem:[%s1] sm:$0xff]
    %v56 = vld [vmem:[%s1 + $0x8] sm:$0xff]
    %vm57 = vcmask 64512
    %v59 = vsel %vm57, %v55, 0
    %v62 = vsel %vm57, %v56, 0
    %64 = vmatprep.subr.mxu0 0.0
    %65 = vmatpush1.xpose.msra.mxu0 %v59
    %66 = vmatprep.subr.mxu0 0.0
    %67 = vmatpush1.xpose.msra.mxu0 %v62
    %68 = vmatprep.subr.mxu0 0.0
    %69 = vmatpush1.xpose.msra.mxu0 0.0
    %70 = vmatprep.subr.mxu0 0.0
    %71 = vmatpush1.xpose.msra.mxu0 0.0
    %72 = vmatprep.subr.mxu0 0.0
    %73 = vmatpush1.xpose.msra.mxu0 0.0
    %74 = vmatprep.subr.mxu0 0.0
    %75 = vmatpush1.xpose.msra.mxu0 0.0
    %76 = vmatprep.subr.mxu0 0.0
    %77 = vmatpush1.xpose.msra.mxu0 0.0
    %78 = vmatprep.subr.mxu0 0.0
    %79 = vmatpush1.xpose.msra.mxu0 0.0
    %80 = vmatprep.subr.mxu0 0.0
    %81 = vmatpush1.xpose.msra.mxu0 0.0
    %82 = vmatprep.subr.mxu0 0.0
    %83 = vmatpush1.xpose.msra.mxu0 0.0
    %84 = vmatprep.subr.mxu0 0.0
    %85 = vmatpush1.xpose.msra.mxu0 0.0
    %86 = vmatprep.subr.mxu0 0.0
    %87 = vmatpush1.xpose.msra.mxu0 0.0
    %88 = vmatprep.subr.mxu0 0.0
    %89 = vmatpush1.xpose.msra.mxu0 0.0
    %90 = vmatprep.subr.mxu0 0.0
    %91 = vmatpush1.xpose.msra.mxu0 0.0
    %92 = vmatprep.subr.mxu0 0.0
    %93 = vmatpush1.xpose.msra.mxu0 0.0
    %94 = vmatprep.subr.mxu0 0.0
    %95 = vmatpush1.xpose.msra.mxu0 0.0
    %96 = vmatprep.subr.mxu0 0.0
    %97 = vmatpush1.xpose.msra.mxu0 0.0
    %98 = vmatprep.subr.mxu0 0.0
    %99 = vmatpush1.xpose.msra.mxu0 0.0
    %100 = vmatprep.subr.mxu0 0.0
    %101 = vmatpush1.xpose.msra.mxu0 0.0
    %102 = vmatprep.subr.mxu0 0.0
    %103 = vmatpush1.xpose.msra.mxu0 0.0
    %104 = vmatprep.subr.mxu0 0.0
    %105 = vmatpush1.xpose.msra.mxu0 0.0
    %106 = vmatprep.subr.mxu0 0.0
    %107 = vmatpush1.xpose.msra.mxu0 0.0
    %108 = vmatprep.subr.mxu0 0.0
    %109 = vmatpush1.xpose.msra.mxu0 0.0
    %110 = vmatprep.subr.mxu0 0.0
    %111 = vmatpush1.xpose.msra.mxu0 0.0
    %112 = vmatprep.subr.mxu0 0.0
    %113 = vmatpush1.xpose.msra.mxu0 0.0
    %114 = vmatprep.subr.mxu0 0.0
    %115 = vmatpush1.xpose.msra.mxu0 0.0
    %116 = vmatprep.subr.mxu0 0.0
    %117 = vmatpush1.xpose.msra.mxu0 0.0
    %118 = vmatprep.subr.mxu0 0.0
    %119 = vmatpush1.xpose.msra.mxu0 0.0
    %120 = vmatprep.subr.mxu0 0.0
    %121 = vmatpush1.xpose.msra.mxu0 0.0
    %122 = vmatprep.subr.mxu0 0.0
    %123 = vmatpush1.xpose.msra.mxu0 0.0
    %124 = vmatprep.subr.mxu0 0.0
    %125 = vmatpush1.xpose.msra.mxu0 0.0
    %126 = vmatprep.subr.mxu0 0.0
    %127 = vmatpush1.xpose.msra.mxu0 0.0
    %128 = vmatprep.mubr.f32.mxu0 0.0
    %129 = vmatmul.mubr.f32.gmra.mrb[0].mxu0 %v59
    %v130 = vpop.f32.mrb[0].mxu0
    %v131 = vadd.f32 0.0, %v130
    %v132 = vpop.f32.mrb[0].mxu0
    %133 = vmatprep.mubr.f32.mxu0 0.0
    %134 = vmatmul.mubr.f32.gmra.mrb[0].mxu0 %v62
    %v135 = vpop.f32.mrb[0].mxu0
    %v136 = vadd.f32 0.0, %v135
    %v137 = vpop.f32.mrb[0].mxu0
    %138 = vdwg.mxu0
    %v139 = vmul.f32 %v55, %v55
    %v140 = vmul.f32 %v56, %v56
    %v141 = vsel %vm57, %v139, 0.0
    %142 = vadd.xlane.f32.xlu0 %v141
    %v143 = vpop.xlane.xlu0 %142
    %v144 = vsel %vm57, %v140, 0.0
    %145 = vadd.xlane.f32.xlu0 %v144
    %v146 = vpop.xlane.xlu0 %145
    %v149 = vlaneseq
    %v150 = vand.u32 %v149, 127
    %v151 = vlaneseq
    %v152 = vshrl.u32 %v151, 7
    %v153 = vsub.s32 %v150, %v152
    %v154 = vrot.slane %v143, %v153
    %v155 = vadd.s32 %v150, 4294967288
    %v156 = vlaneseq
    %v157 = vshrl.u32 %v156, 7
    %v158 = vsub.s32 %v155, %v157
    %v159 = vrot.slane %v146, %v158
    %vm160 = vcmask 130112
    %v161 = vsel %vm160, %v159, %v154
    %vm162 = vcmask 1042434
    %v163 = vsel %vm162, %v161, %v161
    %vm164 = vcmask 1043459
    %v165 = vsel %vm164, %v161, %v163
    %vm166 = vcmask 1044484
    %v167 = vsel %vm166, %v161, %v165
    %vm168 = vcmask 1045509
    %v169 = vsel %vm168, %v161, %v167
    %vm170 = vcmask 1046534
    %v171 = vsel %vm170, %v161, %v169
    %vm172 = vcmask 1047559
    %v173 = vsel %vm172, %v161, %v171
    %v175 = vadd.f32 %v143, %v173
    %v176 = vadd.f32 %v146, %v173
    %v177 = vmul.f32 %v131, 2.0
    %v178 = vmul.f32 %v136, 2.0
    %v179 = vsub.f32 %v175, %v177
    %v180 = vsub.f32 %v176, %v178
    %v181 = vmax.f32 %v179, 0.0
    %v182 = vmax.f32 %v180, 0.0
    %v183 = vlaneseq
    %v184 = vshrl.u32 %v183, 7
    %v185 = vadd.s32 %v184, 8
    %vm186 = vcmp.eq.s32.totalorder %v184, %v150
    %vm187 = vcmp.eq.s32.totalorder %v185, %v150
    %v188 = vsel %vm186, 100.0, %v181
    %v189 = vsel %vm187, 100.0, %v182
    %vm190 = vcmask 130048
    %v191 = vsel %vm190, %v188, inf
    %v192 = vsel %vm190, %v189, inf
    %v193 = vmin.f32 %v191, %v192
    %194 = vmin.xlane.f32.xlu0 %v193
    %v195 = vpop.xlane.xlu0 %194
    %v196 = vrot.slane %v195, 4
    %v197 = vmin.f32 %v195, %v196
    %v198 = vrot.slane %v197, 2
    %v199 = vmin.f32 %v197, %v198
    %v200 = vrot.slane %v199, 1
    %v201 = vmin.f32 %v199, %v200
    %s202 = vtos %v201
    %v203 = vstv %s202
    %v204 = vadd.f32 %v188, %v203
    %v205 = vadd.f32 %v189, %v203
    %v206 = vmax.f32 %v204, 0.0
    %v207 = vmax.f32 %v205, 0.0
    %v208 = vmin.f32 %v206, 10.0
    %v209 = vmin.f32 %v207, 10.0
    %v210 = vmul.f32 %v208, -5.0
    %v211 = vmul.f32 %v209, -5.0
    %v212 = vmul.f32 %v210, 1.442695
    %v213 = vpow.pop %v212
    %v214 = vmul.f32 %v211, 1.442695
    %v215 = vpow.pop %v214
    %v216 = vsel %vm190, %v213, 0.0
    %217 = vadd.xlane.f32.xlu0 %v216
    %v218 = vpop.xlane.xlu0 %217
    %v219 = vsel %vm190, %v215, 0.0
    %220 = vadd.xlane.f32.xlu0 %v219
    %v221 = vpop.xlane.xlu0 %220
    %v222 = vadd.f32 %v216, %v219
    %v223 = vrot.slane %v222, 4
    %v224 = vadd.f32 %v222, %v223
    %v225 = vrot.slane %v224, 2
    %v226 = vadd.f32 %v224, %v225
    %v227 = vrot.slane %v226, 1
    %v228 = vadd.f32 %v226, %v227
    %v229 = vmul.f32 %v213, 0.5
    %v230 = vmul.f32 %v215, 0.5
    %v231 = vrcp.pop %v218
    %v232 = vmul.f32 1.0, %v231
    %v233 = vrcp.pop %v221
    %v234 = vmul.f32 1.0, %v233
    %v235 = vrcp.pop %v228
    %v236 = vmul.f32 1.0, %v235
    %v237 = vadd.f32 %v232, %v236
    %v238 = vadd.f32 %v234, %v236
    %v239 = vmul.f32 %v229, %v237
    %v240 = vmul.f32 %v230, %v238
    %v241 = vmul.f32 %v47, %v47
    %v242 = vmul.f32 %v48, %v48
    %v243 = vmul.f32 %v49, %v49
    %v244 = vmul.f32 %v50, %v50
    %v245 = vmul.f32 %v51, %v51
    %v246 = vmul.f32 %v52, %v52
    %v247 = vmul.f32 %v53, %v53
    %v248 = vmul.f32 %v54, %v54
    %v249 = vsel %vm57, %v241, 0.0
    %250 = vadd.xlane.f32.xlu0 %v249
    %v251 = vpop.xlane.xlu0 %250
    %v252 = vsel %vm57, %v242, 0.0
    %253 = vadd.xlane.f32.xlu0 %v252
    %v254 = vpop.xlane.xlu0 %253
    %v255 = vsel %vm57, %v243, 0.0
    %256 = vadd.xlane.f32.xlu0 %v255
    %v257 = vpop.xlane.xlu0 %256
    %v258 = vsel %vm57, %v244, 0.0
    %259 = vadd.xlane.f32.xlu0 %v258
    %v260 = vpop.xlane.xlu0 %259
    %v261 = vsel %vm57, %v245, 0.0
    %262 = vadd.xlane.f32.xlu0 %v261
    %v263 = vpop.xlane.xlu0 %262
    %v264 = vsel %vm57, %v246, 0.0
    %265 = vadd.xlane.f32.xlu0 %v264
    %v266 = vpop.xlane.xlu0 %265
    %v267 = vsel %vm57, %v247, 0.0
    %268 = vadd.xlane.f32.xlu0 %v267
    %v269 = vpop.xlane.xlu0 %268
    %v270 = vsel %vm57, %v248, 0.0
    %271 = vadd.xlane.f32.xlu0 %v270
    %v272 = vpop.xlane.xlu0 %271
    %vm273 = vcmp.ne.s32.totalorder %v184, %v150
    %vm274 = vcmp.ne.s32.totalorder %v185, %v150
    %v275 = vsel %vm273, 1, 0
    %v276 = vsel %vm274, 1, 0
    %v277 = vcvt.s32.f32 %v275
    %v278 = vcvt.s32.f32 %v276
    %vm279 = vcmp.gt.s32.totalorder %v150, %v184
    %vm280 = vcmp.gt.s32.totalorder %v150, %v185
    %v281 = vsel %vm279, 1, 0
    %v282 = vsel %vm280, 1, 0
    %v283 = vcvt.s32.f32 %v281
    %v284 = vcvt.s32.f32 %v282
    %v285 = vsel %vm190, %v239, 0.0
    %286 = vadd.xlane.f32.xlu0 %v285
    %v287 = vpop.xlane.xlu0 %286
    %v288 = vsel %vm190, %v240, 0.0
    %289 = vadd.xlane.f32.xlu0 %v288
    %v290 = vpop.xlane.xlu0 %289
    %vm291 = vcmp.gt.f32.partialorder %v287, 1.0
    %vm292 = vcmp.gt.f32.partialorder %v290, 1.0
    %v293 = vsel %vm291, 1, 0
    %v294 = vsel %vm292, 1, 0
    %v295 = vcvt.s32.f32 %v293
    %v296 = vcvt.s32.f32 %v294
    %v297 = vmul.f32 %v239, %v277
    %v298 = vmul.f32 %v240, %v278
    %v299 = vsel %vm190, %v297, 0.0
    %300 = vadd.xlane.f32.xlu0 %v299
    %v301 = vpop.xlane.xlu0 %300
    %v302 = vsel %vm190, %v298, 0.0
    %303 = vadd.xlane.f32.xlu0 %v302
    %v304 = vpop.xlane.xlu0 %303
    %305 = vst.msk [vmem:[#allocation2] sm:$0xff] %vm57, %v55
    %306 = vst.msk [vmem:[#allocation2 + $0x8] sm:$0xff] %vm57, %v56
    %307 = vst.msk [vmem:[#allocation3] sm:$0xff] %vm57, 0.0
    %308 = vst.msk [vmem:[#allocation3 + $0x8] sm:$0xff] %vm57, 0.0
    %309 = vst.msk [vmem:[#allocation4] sm:$0xff] %vm57, 0.0
    %310 = vst.msk [vmem:[#allocation4 + $0x8] sm:$0xff] %vm57, 0.0
    loop: start=0, step=1, limit=50
    $region26: #{fuzzy_elpigraph_forward.1} parent=1 // loop_pre_header
      _
    $region27: #{fuzzy_elpigraph_forward.1} parent=1 // loop_header
      %s312 = sphi 0, %s316
      %p313 = scmp.ge.s32.totalorder %s312, 50
    $region28: #{fuzzy_elpigraph_forward.1} parent=1 // loop_header_branch
      %315 = sbr.rel (%p313) target = $region32
    $region29: #{fuzzy_elpigraph_forward.1} parent=1 // loop_body
      %v317 = vld [vmem:[#allocation2] sm:$0xff]
      %v318 = vld [vmem:[#allocation2 + $0x8] sm:$0xff]
      %v319 = vmul.f32 %v317, %v317
      %v320 = vmul.f32 %v318, %v318
      %v321 = vsel %vm57, %v319, 0.0
      %322 = vadd.xlane.f32.xlu0 %v321
      %v323 = vpop.xlane.xlu0 %322
      %v324 = vsel %vm57, %v320, 0.0
      %325 = vadd.xlane.f32.xlu0 %v324
      %v326 = vpop.xlane.xlu0 %325
      %v328 = vsel %vm57, %v317, 0
      %v331 = vsel %vm57, %v318, 0
      %v334 = vsel %vm57, %v47, 0
      %v337 = vsel %vm57, %v48, 0
      %v340 = vsel %vm57, %v49, 0
      %v343 = vsel %vm57, %v50, 0
      %v346 = vsel %vm57, %v51, 0
      %v349 = vsel %vm57, %v52, 0
      %v352 = vsel %vm57, %v53, 0
      %v355 = vsel %vm57, %v54, 0
      %357 = vmatprep.subr.mxu0 0.0
      %358 = vmatpush1.xpose.msra.mxu0 %v334
      %359 = vmatprep.subr.mxu0 0.0
      %360 = vmatpush1.xpose.msra.mxu0 %v337
      %361 = vmatprep.subr.mxu0 0.0
      %362 = vmatpush1.xpose.msra.mxu0 %v340
      %363 = vmatprep.subr.mxu0 0.0
      %364 = vmatpush1.xpose.msra.mxu0 %v343
      %365 = vmatprep.subr.mxu0 0.0
      %366 = vmatpush1.xpose.msra.mxu0 %v346
      %367 = vmatprep.subr.mxu0 0.0
      %368 = vmatpush1.xpose.msra.mxu0 %v349
      %369 = vmatprep.subr.mxu0 0.0
      %370 = vmatpush1.xpose.msra.mxu0 %v352
      %371 = vmatprep.subr.mxu0 0.0
      %372 = vmatpush1.xpose.msra.mxu0 %v355
      %373 = vmatprep.subr.mxu0 0.0
      %374 = vmatpush1.xpose.msra.mxu0 0.0
      %375 = vmatprep.subr.mxu0 0.0
      %376 = vmatpush1.xpose.msra.mxu0 0.0
      %377 = vmatprep.subr.mxu0 0.0
      %378 = vmatpush1.xpose.msra.mxu0 0.0
      %379 = vmatprep.subr.mxu0 0.0
      %380 = vmatpush1.xpose.msra.mxu0 0.0
      %381 = vmatprep.subr.mxu0 0.0
      %382 = vmatpush1.xpose.msra.mxu0 0.0
      %383 = vmatprep.subr.mxu0 0.0
      %384 = vmatpush1.xpose.msra.mxu0 0.0
      %385 = vmatprep.subr.mxu0 0.0
      %386 = vmatpush1.xpose.msra.mxu0 0.0
      %387 = vmatprep.subr.mxu0 0.0
      %388 = vmatpush1.xpose.msra.mxu0 0.0
      %389 = vmatprep.subr.mxu0 0.0
      %390 = vmatpush1.xpose.msra.mxu0 0.0
      %391 = vmatprep.subr.mxu0 0.0
      %392 = vmatpush1.xpose.msra.mxu0 0.0
      %393 = vmatprep.subr.mxu0 0.0
      %394 = vmatpush1.xpose.msra.mxu0 0.0
      %395 = vmatprep.subr.mxu0 0.0
      %396 = vmatpush1.xpose.msra.mxu0 0.0
      %397 = vmatprep.subr.mxu0 0.0
      %398 = vmatpush1.xpose.msra.mxu0 0.0
      %399 = vmatprep.subr.mxu0 0.0
      %400 = vmatpush1.xpose.msra.mxu0 0.0
      %401 = vmatprep.subr.mxu0 0.0
      %402 = vmatpush1.xpose.msra.mxu0 0.0
      %403 = vmatprep.subr.mxu0 0.0
      %404 = vmatpush1.xpose.msra.mxu0 0.0
      %405 = vmatprep.subr.mxu0 0.0
      %406 = vmatpush1.xpose.msra.mxu0 0.0
      %407 = vmatprep.subr.mxu0 0.0
      %408 = vmatpush1.xpose.msra.mxu0 0.0
      %409 = vmatprep.subr.mxu0 0.0
      %410 = vmatpush1.xpose.msra.mxu0 0.0
      %411 = vmatprep.subr.mxu0 0.0
      %412 = vmatpush1.xpose.msra.mxu0 0.0
      %413 = vmatprep.subr.mxu0 0.0
      %414 = vmatpush1.xpose.msra.mxu0 0.0
      %415 = vmatprep.subr.mxu0 0.0
      %416 = vmatpush1.xpose.msra.mxu0 0.0
      %417 = vmatprep.subr.mxu0 0.0
      %418 = vmatpush1.xpose.msra.mxu0 0.0
      %419 = vmatprep.subr.mxu0 0.0
      %420 = vmatpush1.xpose.msra.mxu0 0.0
      %421 = vmatprep.mubr.f32.mxu0 0.0
      %422 = vmatmul.mubr.f32.gmra.mrb[0].mxu0 %v328
      %v423 = vpop.f32.mrb[0].mxu0
      %v424 = vadd.f32 0.0, %v423
      %v425 = vpop.f32.mrb[0].mxu0
      %426 = vmatprep.mubr.f32.mxu0 0.0
      %427 = vmatmul.mubr.f32.gmra.mrb[0].mxu0 %v331
      %v428 = vpop.f32.mrb[0].mxu0
      %v429 = vadd.f32 0.0, %v428
      %v430 = vpop.f32.mrb[0].mxu0
      %431 = vdwg.mxu0
      %v440 = vlaneseq
      %v441 = vshrl.u32 %v440, 7
      %v442 = vsub.s32 %v150, %v441
      %v443 = vrot.slane %v251, %v442
      %v444 = vlaneseq
      %v445 = vshrl.u32 %v444, 7
      %v446 = vsub.s32 %v155, %v445
      %v447 = vrot.slane %v254, %v446
      %v448 = vsel %vm160, %v447, %v443
      %v449 = vadd.s32 %v150, 4294967280
      %v450 = vlaneseq
      %v451 = vshrl.u32 %v450, 7
      %v452 = vsub.s32 %v449, %v451
      %v453 = vrot.slane %v257, %v452
      %vm454 = vcmask 195712
      %v455 = vsel %vm454, %v453, %v448
      %v456 = vadd.s32 %v150, 4294967272
      %v457 = vlaneseq
      %v458 = vshrl.u32 %v457, 7
      %v459 = vsub.s32 %v456, %v458
      %v460 = vrot.slane %v260, %v459
      %vm461 = vcmask 261312
      %v462 = vsel %vm461, %v460, %v455
      %v463 = vadd.s32 %v150, 4294967264
      %v464 = vlaneseq
      %v465 = vshrl.u32 %v464, 7
      %v466 = vsub.s32 %v463, %v465
      %v467 = vrot.slane %v263, %v466
      %vm468 = vcmask 326912
      %v469 = vsel %vm468, %v467, %v462
      %v470 = vadd.s32 %v150, 4294967256
      %v471 = vlaneseq
      %v472 = vshrl.u32 %v471, 7
      %v473 = vsub.s32 %v470, %v472
      %v474 = vrot.slane %v266, %v473
      %vm475 = vcmask 392512
      %v476 = vsel %vm475, %v474, %v469
      %v477 = vadd.s32 %v150, 4294967248
      %v478 = vlaneseq
      %v479 = vshrl.u32 %v478, 7
      %v480 = vsub.s32 %v477, %v479
      %v481 = vrot.slane %v269, %v480
      %vm482 = vcmask 458112
      %v483 = vsel %vm482, %v481, %v476
      %v484 = vadd.s32 %v150, 4294967240
      %v485 = vlaneseq
      %v486 = vshrl.u32 %v485, 7
      %v487 = vsub.s32 %v484, %v486
      %v488 = vrot.slane %v272, %v487
      %vm489 = vcmask 523712
      %v490 = vsel %vm489, %v488, %v483
      %v491 = vsel %vm162, %v490, %v490
      %v492 = vsel %vm164, %v490, %v491
      %v493 = vsel %vm166, %v490, %v492
      %v494 = vsel %vm168, %v490, %v493
      %v495 = vsel %vm170, %v490, %v494
      %v496 = vsel %vm172, %v490, %v495
      %v498 = vadd.f32 %v323, %v496
      %v499 = vadd.f32 %v326, %v496
      %v500 = vmul.f32 %v424, 2.0
      %v501 = vmul.f32 %v429, 2.0
      %v502 = vsub.f32 %v498, %v500
      %v503 = vsub.f32 %v499, %v501
      %v504 = vmax.f32 %v502, 0.0
      %v505 = vmax.f32 %v503, 0.0
      %vm506 = vcmask 523264
      %v507 = vsel %vm506, %v504, inf
      %v508 = vsel %vm506, %v505, inf
      %v509 = vmin.f32 %v507, %v508
      %510 = vmin.xlane.f32.xlu0 %v509
      %v511 = vpop.xlane.xlu0 %510
      %v512 = vrot.slane %v511, 4
      %v513 = vmin.f32 %v511, %v512
      %v514 = vrot.slane %v513, 2
      %v515 = vmin.f32 %v513, %v514
      %v516 = vrot.slane %v515, 1
      %v517 = vmin.f32 %v515, %v516
      %s518 = vtos %v517
      %v519 = vstv %s518
      %v520 = vadd.f32 %v504, %v519
      %v521 = vadd.f32 %v505, %v519
      %v522 = vmax.f32 %v520, 0.0
      %v523 = vmax.f32 %v521, 0.0
      %v524 = vmin.f32 %v522, 10.0
      %v525 = vmin.f32 %v523, 10.0
      %v526 = vsel %vm506, %v524, inf
      %v527 = vsel %vm506, %v525, inf
      %v528 = vmin.f32 %v526, %v527
      %v529 = vrot.slane %v528, 4
      %v530 = vmin.f32 %v528, %v529
      %v531 = vrot.slane %v530, 2
      %v532 = vmin.f32 %v530, %v531
      %v533 = vrot.slane %v532, 1
      %v534 = vmin.f32 %v532, %v533
      %v535 = vsub.f32 %v524, %v534
      %v536 = vsub.f32 %v525, %v534
      %v537 = vmul.f32 %v535, -5.0
      %v538 = vmul.f32 %v536, -5.0
      %v539 = vmul.f32 %v537, 1.442695
      %v540 = vpow.pop %v539
      %v541 = vmul.f32 %v538, 1.442695
      %v542 = vpow.pop %v541
      %v543 = vsel %vm506, %v540, 0.0
      %v544 = vsel %vm506, %v542, 0.0
      %v545 = vadd.f32 %v543, %v544
      %v546 = vrot.slane %v545, 4
      %v547 = vadd.f32 %v545, %v546
      %v548 = vrot.slane %v547, 2
      %v549 = vadd.f32 %v547, %v548
      %v550 = vrot.slane %v549, 1
      %v551 = vadd.f32 %v549, %v550
      %v552 = vrcp.pop %v551
      %v553 = vmul.f32 %v540, %v552
      %v554 = vmul.f32 %v542, %v552
      %v555 = vmul.f32 %v504, %v553
      %v556 = vmul.f32 %v505, %v554
      %v557 = vsel %vm506, %v555, 0.0
      %v558 = vsel %vm506, %v556, 0.0
      %v559 = vadd.f32 %v557, %v558
      %v560 = vrot.slane %v559, 4
      %v561 = vadd.f32 %v559, %v560
      %v562 = vrot.slane %v561, 2
      %v563 = vadd.f32 %v561, %v562
      %v564 = vrot.slane %v563, 1
      %v565 = vadd.f32 %v563, %v564
      %v567 = vsel %vm190, %v239, 0
      %v570 = vsel %vm190, %v240, 0
      %572 = vmatprep.subr.mxu0 0.0
      %573 = vmatpush1.msra.mxu0 %v317
      %574 = vmatprep.subr.mxu0 0.0
      %575 = vmatpush1.msra.mxu0 %v318
      %576 = vmatprep.subr.mxu0 0.0
      %577 = vmatpush1.msra.mxu0 0.0
      %578 = vmatprep.subr.mxu0 0.0
      %579 = vmatpush1.msra.mxu0 0.0
      %580 = vmatprep.subr.mxu0 0.0
      %581 = vmatpush1.msra.mxu0 0.0
      %582 = vmatprep.subr.mxu0 0.0
      %583 = vmatpush1.msra.mxu0 0.0
      %584 = vmatprep.subr.mxu0 0.0
      %585 = vmatpush1.msra.mxu0 0.0
      %586 = vmatprep.subr.mxu0 0.0
      %587 = vmatpush1.msra.mxu0 0.0
      %588 = vmatprep.subr.mxu0 0.0
      %589 = vmatpush1.msra.mxu0 0.0
      %590 = vmatprep.subr.mxu0 0.0
      %591 = vmatpush1.msra.mxu0 0.0
      %592 = vmatprep.subr.mxu0 0.0
      %593 = vmatpush1.msra.mxu0 0.0
      %594 = vmatprep.subr.mxu0 0.0
      %595 = vmatpush1.msra.mxu0 0.0
      %596 = vmatprep.subr.mxu0 0.0
      %597 = vmatpush1.msra.mxu0 0.0
      %598 = vmatprep.subr.mxu0 0.0
      %599 = vmatpush1.msra.mxu0 0.0
      %600 = vmatprep.subr.mxu0 0.0
      %601 = vmatpush1.msra.mxu0 0.0
      %602 = vmatprep.subr.mxu0 0.0
      %603 = vmatpush1.msra.mxu0 0.0
      %604 = vmatprep.subr.mxu0 0.0
      %605 = vmatpush1.msra.mxu0 0.0
      %606 = vmatprep.subr.mxu0 0.0
      %607 = vmatpush1.msra.mxu0 0.0
      %608 = vmatprep.subr.mxu0 0.0
      %609 = vmatpush1.msra.mxu0 0.0
      %610 = vmatprep.subr.mxu0 0.0
      %611 = vmatpush1.msra.mxu0 0.0
      %612 = vmatprep.subr.mxu0 0.0
      %613 = vmatpush1.msra.mxu0 0.0
      %614 = vmatprep.subr.mxu0 0.0
      %615 = vmatpush1.msra.mxu0 0.0
      %616 = vmatprep.subr.mxu0 0.0
      %617 = vmatpush1.msra.mxu0 0.0
      %618 = vmatprep.subr.mxu0 0.0
      %619 = vmatpush1.msra.mxu0 0.0
      %620 = vmatprep.subr.mxu0 0.0
      %621 = vmatpush1.msra.mxu0 0.0
      %622 = vmatprep.subr.mxu0 0.0
      %623 = vmatpush1.msra.mxu0 0.0
      %624 = vmatprep.subr.mxu0 0.0
      %625 = vmatpush1.msra.mxu0 0.0
      %626 = vmatprep.subr.mxu0 0.0
      %627 = vmatpush1.msra.mxu0 0.0
      %628 = vmatprep.subr.mxu0 0.0
      %629 = vmatpush1.msra.mxu0 0.0
      %630 = vmatprep.subr.mxu0 0.0
      %631 = vmatpush1.msra.mxu0 0.0
      %632 = vmatprep.subr.mxu0 0.0
      %633 = vmatpush1.msra.mxu0 0.0
      %634 = vmatprep.subr.mxu0 0.0
      %635 = vmatpush1.msra.mxu0 0.0
      %636 = vmatprep.mubr.f32.mxu0 0.0
      %637 = vmatmul.mubr.f32.gmra.mrb[0].mxu0 %v567
      %v638 = vpop.f32.mrb[0].mxu0
      %v639 = vadd.f32 0.0, %v638
      %v640 = vpop.f32.mrb[0].mxu0
      %641 = vmatprep.mubr.f32.mxu0 0.0
      %642 = vmatmul.mubr.f32.gmra.mrb[0].mxu0 %v570
      %v643 = vpop.f32.mrb[0].mxu0
      %v644 = vadd.f32 0.0, %v643
      %v645 = vpop.f32.mrb[0].mxu0
      %646 = vdwg.mxu0
      %v647 = vrcp.pop %v287
      %v648 = vmul.f32 %v639, %v647
      %v649 = vrcp.pop %v290
      %v650 = vmul.f32 %v644, %v649
      %vm651 = vcmp.eq.s32.totalorder %v293, 1
      %vm652 = vcmp.eq.s32.totalorder %v294, 1
      %v653 = vsel %vm651, %v648, 0.0
      %v654 = vsel %vm652, %v650, 0.0
      %v655 = vsub.f32 %v317, %v653
      %v656 = vsub.f32 %v318, %v654
      %vm657 = vcmp.lt.f32.partialorder %v520, 10.0
      %vm658 = vcmp.lt.f32.partialorder %v521, 10.0
      %v659 = vsel %vm657, 1, 0
      %v660 = vsel %vm658, 1, 0
      %v661 = vcvt.s32.f32 %v659
      %v662 = vcvt.s32.f32 %v660
      %v663 = vmul.f32 %v553, -0.078125
      %v664 = vmul.f32 %v554, -0.078125
      %v665 = vsub.f32 %v504, %v565
      %v666 = vsub.f32 %v505, %v565
      %v667 = vmul.f32 %v663, %v665
      %v668 = vmul.f32 %v664, %v666
      %v669 = vmul.f32 %v667, %v661
      %v670 = vmul.f32 %v668, %v662
      %v671 = vsel %vm506, %v669, 0.0
      %v672 = vsel %vm506, %v670, 0.0
      %v673 = vadd.f32 %v671, %v672
      %674 = vadd.xlane.f32.xlu0 %v673
      %v675 = vpop.xlane.xlu0 %674
      %v676 = vrot.slane %v675, 4
      %v677 = vadd.f32 %v675, %v676
      %v678 = vrot.slane %v677, 2
      %v679 = vadd.f32 %v677, %v678
      %v680 = vrot.slane %v679, 1
      %v681 = vadd.f32 %v679, %v680
      %s682 = vtos %v681
      %vm683 = vcmp.eq.f32.partialorder %v504, %v519
      %vm684 = vcmp.eq.f32.partialorder %v505, %v519
      %v685 = vsel %vm683, 1, 0
      %v686 = vsel %vm684, 1, 0
      %v687 = vcvt.s32.f32 %v685
      %v688 = vcvt.s32.f32 %v686
      %v689 = vsel %vm506, %v687, 0.0
      %v690 = vsel %vm506, %v688, 0.0
      %v691 = vadd.f32 %v689, %v690
      %692 = vadd.xlane.f32.xlu0 %v691
      %v693 = vpop.xlane.xlu0 %692
      %v694 = vrot.slane %v693, 4
      %v695 = vadd.f32 %v693, %v694
      %v696 = vrot.slane %v695, 2
      %v697 = vadd.f32 %v695, %v696
      %v698 = vrot.slane %v697, 1
      %v699 = vadd.f32 %v697, %v698
      %s700 = vtos %v699
      %v701 = vstv %s700
      %v702 = vrcp.pop %v701
      %v703 = vmul.f32 %v687, %v702
      %v704 = vmul.f32 %v688, %v702
      %v705 = vmul.f32 %v553, 0.015625
      %v706 = vmul.f32 %v554, 0.015625
      %v707 = vadd.f32 %v705, %v669
      %v708 = vadd.f32 %v706, %v670
      %v709 = vstv %s682
      %v710 = vmul.f32 %v709, %v703
      %v711 = vmul.f32 %v709, %v704
      %v712 = vadd.f32 %v707, %v710
      %v713 = vadd.f32 %v708, %v711
      %vm714 = vcmp.gt.f32.partialorder %v502, 0.0
      %vm715 = vcmp.gt.f32.partialorder %v503, 0.0
      %v716 = vsel %vm714, 1, 0
      %v717 = vsel %vm715, 1, 0
      %v718 = vcvt.s32.f32 %v716
      %v719 = vcvt.s32.f32 %v717
      %v720 = vmul.f32 %v712, %v718
      %v721 = vmul.f32 %v713, %v719
      %v722 = vsel %vm506, %v720, 0.0
      %723 = vadd.xlane.f32.xlu0 %v722
      %v724 = vpop.xlane.xlu0 %723
      %v725 = vsel %vm506, %v721, 0.0
      %726 = vadd.xlane.f32.xlu0 %v725
      %v727 = vpop.xlane.xlu0 %726
      %v729 = vsel %vm506, %v720, 0
      %v732 = vsel %vm506, %v721, 0
      %734 = vmatprep.subr.mxu0 0.0
      %735 = vmatpush1.msra.mxu0 %v47
      %736 = vmatprep.subr.mxu0 0.0
      %737 = vmatpush1.msra.mxu0 %v48
      %738 = vmatprep.subr.mxu0 0.0
      %739 = vmatpush1.msra.mxu0 %v49
      %740 = vmatprep.subr.mxu0 0.0
      %741 = vmatpush1.msra.mxu0 %v50
      %742 = vmatprep.subr.mxu0 0.0
      %743 = vmatpush1.msra.mxu0 %v51
      %744 = vmatprep.subr.mxu0 0.0
      %745 = vmatpush1.msra.mxu0 %v52
      %746 = vmatprep.subr.mxu0 0.0
      %747 = vmatpush1.msra.mxu0 %v53
      %748 = vmatprep.subr.mxu0 0.0
      %749 = vmatpush1.msra.mxu0 %v54
      %750 = vmatprep.subr.mxu0 0.0
      %751 = vmatpush1.msra.mxu0 0.0
      %752 = vmatprep.subr.mxu0 0.0
      %753 = vmatpush1.msra.mxu0 0.0
      %754 = vmatprep.subr.mxu0 0.0
      %755 = vmatpush1.msra.mxu0 0.0
      %756 = vmatprep.subr.mxu0 0.0
      %757 = vmatpush1.msra.mxu0 0.0
      %758 = vmatprep.subr.mxu0 0.0
      %759 = vmatpush1.msra.mxu0 0.0
      %760 = vmatprep.subr.mxu0 0.0
      %761 = vmatpush1.msra.mxu0 0.0
      %762 = vmatprep.subr.mxu0 0.0
      %763 = vmatpush1.msra.mxu0 0.0
      %764 = vmatprep.subr.mxu0 0.0
      %765 = vmatpush1.msra.mxu0 0.0
      %766 = vmatprep.subr.mxu0 0.0
      %767 = vmatpush1.msra.mxu0 0.0
      %768 = vmatprep.subr.mxu0 0.0
      %769 = vmatpush1.msra.mxu0 0.0
      %770 = vmatprep.subr.mxu0 0.0
      %771 = vmatpush1.msra.mxu0 0.0
      %772 = vmatprep.subr.mxu0 0.0
      %773 = vmatpush1.msra.mxu0 0.0
      %774 = vmatprep.subr.mxu0 0.0
      %775 = vmatpush1.msra.mxu0 0.0
      %776 = vmatprep.subr.mxu0 0.0
      %777 = vmatpush1.msra.mxu0 0.0
      %778 = vmatprep.subr.mxu0 0.0
      %779 = vmatpush1.msra.mxu0 0.0
      %780 = vmatprep.subr.mxu0 0.0
      %781 = vmatpush1.msra.mxu0 0.0
      %782 = vmatprep.subr.mxu0 0.0
      %783 = vmatpush1.msra.mxu0 0.0
      %784 = vmatprep.subr.mxu0 0.0
      %785 = vmatpush1.msra.mxu0 0.0
      %786 = vmatprep.subr.mxu0 0.0
      %787 = vmatpush1.msra.mxu0 0.0
      %788 = vmatprep.subr.mxu0 0.0
      %789 = vmatpush1.msra.mxu0 0.0
      %790 = vmatprep.subr.mxu0 0.0
      %791 = vmatpush1.msra.mxu0 0.0
      %792 = vmatprep.subr.mxu0 0.0
      %793 = vmatpush1.msra.mxu0 0.0
      %794 = vmatprep.subr.mxu0 0.0
      %795 = vmatpush1.msra.mxu0 0.0
      %796 = vmatprep.subr.mxu0 0.0
      %797 = vmatpush1.msra.mxu0 0.0
      %798 = vmatprep.mubr.f32.mxu0 0.0
      %799 = vmatmul.mubr.f32.gmra.mrb[0].mxu0 %v729
      %v800 = vpop.f32.mrb[0].mxu0
      %v801 = vadd.f32 0.0, %v800
      %v802 = vpop.f32.mrb[0].mxu0
      %803 = vmatprep.mubr.f32.mxu0 0.0
      %804 = vmatmul.mubr.f32.gmra.mrb[0].mxu0 %v732
      %v805 = vpop.f32.mrb[0].mxu0
      %v806 = vadd.f32 0.0, %v805
      %v807 = vpop.f32.mrb[0].mxu0
      %808 = vdwg.mxu0
      %v809 = vmul.f32 %v724, %v317
      %v810 = vmul.f32 %v727, %v318
      %v811 = vsub.f32 %v809, %v801
      %v812 = vsub.f32 %v810, %v806
      %v813 = vmul.f32 %v811, 2.0
      %v814 = vmul.f32 %v812, 2.0
      %v816 = vsel %vm190, %v297, 0
      %v819 = vsel %vm190, %v298, 0
      %821 = vmatprep.subr.mxu0 0.0
      %822 = vmatpush1.msra.mxu0 %v317
      %823 = vmatprep.subr.mxu0 0.0
      %824 = vmatpush1.msra.mxu0 %v318
      %825 = vmatprep.subr.mxu0 0.0
      %826 = vmatpush1.msra.mxu0 0.0
      %827 = vmatprep.subr.mxu0 0.0
      %828 = vmatpush1.msra.mxu0 0.0
      %829 = vmatprep.subr.mxu0 0.0
      %830 = vmatpush1.msra.mxu0 0.0
      %831 = vmatprep.subr.mxu0 0.0
      %832 = vmatpush1.msra.mxu0 0.0
      %833 = vmatprep.subr.mxu0 0.0
      %834 = vmatpush1.msra.mxu0 0.0
      %835 = vmatprep.subr.mxu0 0.0
      %836 = vmatpush1.msra.mxu0 0.0
      %837 = vmatprep.subr.mxu0 0.0
      %838 = vmatpush1.msra.mxu0 0.0
      %839 = vmatprep.subr.mxu0 0.0
      %840 = vmatpush1.msra.mxu0 0.0
      %841 = vmatprep.subr.mxu0 0.0
      %842 = vmatpush1.msra.mxu0 0.0
      %843 = vmatprep.subr.mxu0 0.0
      %844 = vmatpush1.msra.mxu0 0.0
      %845 = vmatprep.subr.mxu0 0.0
      %846 = vmatpush1.msra.mxu0 0.0
      %847 = vmatprep.subr.mxu0 0.0
      %848 = vmatpush1.msra.mxu0 0.0
      %849 = vmatprep.subr.mxu0 0.0
      %850 = vmatpush1.msra.mxu0 0.0
      %851 = vmatprep.subr.mxu0 0.0
      %852 = vmatpush1.msra.mxu0 0.0
      %853 = vmatprep.subr.mxu0 0.0
      %854 = vmatpush1.msra.mxu0 0.0
      %855 = vmatprep.subr.mxu0 0.0
      %856 = vmatpush1.msra.mxu0 0.0
      %857 = vmatprep.subr.mxu0 0.0
      %858 = vmatpush1.msra.mxu0 0.0
      %859 = vmatprep.subr.mxu0 0.0
      %860 = vmatpush1.msra.mxu0 0.0
      %861 = vmatprep.subr.mxu0 0.0
      %862 = vmatpush1.msra.mxu0 0.0
      %863 = vmatprep.subr.mxu0 0.0
      %864 = vmatpush1.msra.mxu0 0.0
      %865 = vmatprep.subr.mxu0 0.0
      %866 = vmatpush1.msra.mxu0 0.0
      %867 = vmatprep.subr.mxu0 0.0
      %868 = vmatpush1.msra.mxu0 0.0
      %869 = vmatprep.subr.mxu0 0.0
      %870 = vmatpush1.msra.mxu0 0.0
      %871 = vmatprep.subr.mxu0 0.0
      %872 = vmatpush1.msra.mxu0 0.0
      %873 = vmatprep.subr.mxu0 0.0
      %874 = vmatpush1.msra.mxu0 0.0
      %875 = vmatprep.subr.mxu0 0.0
      %876 = vmatpush1.msra.mxu0 0.0
      %877 = vmatprep.subr.mxu0 0.0
      %878 = vmatpush1.msra.mxu0 0.0
      %879 = vmatprep.subr.mxu0 0.0
      %880 = vmatpush1.msra.mxu0 0.0
      %881 = vmatprep.subr.mxu0 0.0
      %882 = vmatpush1.msra.mxu0 0.0
      %883 = vmatprep.subr.mxu0 0.0
      %884 = vmatpush1.msra.mxu0 0.0
      %885 = vmatprep.mubr.f32.mxu0 0.0
      %886 = vmatmul.mubr.f32.gmra.mrb[0].mxu0 %v816
      %v887 = vpop.f32.mrb[0].mxu0
      %v888 = vadd.f32 0.0, %v887
      %v889 = vpop.f32.mrb[0].mxu0
      %890 = vmatprep.mubr.f32.mxu0 0.0
      %891 = vmatmul.mubr.f32.gmra.mrb[0].mxu0 %v819
      %v892 = vpop.f32.mrb[0].mxu0
      %v893 = vadd.f32 0.0, %v892
      %v894 = vpop.f32.mrb[0].mxu0
      %895 = vdwg.mxu0
      %v896 = vmul.f32 %v301, %v317
      %v897 = vmul.f32 %v304, %v318
      %v898 = vsub.f32 %v896, %v888
      %v899 = vsub.f32 %v897, %v893
      %v900 = vmul.f32 %v898, 2.0
      %v901 = vmul.f32 %v899, 2.0
      %v902 = vmul.f32 %v295, 2.0
      %v903 = vmul.f32 %v296, 2.0
      %v904 = vmul.f32 %v902, %v655
      %v905 = vmul.f32 %v903, %v656
      %v906 = vmul.f32 %v904, %v647
      %v907 = vmul.f32 %v905, %v649
      %v908 = vsel %vm651, %v906, 0.0
      %v909 = vsel %vm652, %v907, 0.0
      %910 = vmatprep.subr.mxu0 0.0
      %911 = vmatpush1.msra.mxu0 %v908
      %912 = vmatprep.subr.mxu0 0.0
      %913 = vmatpush1.msra.mxu0 %v909
      %914 = vmatprep.subr.mxu0 0.0
      %915 = vmatpush1.msra.mxu0 0.0
      %916 = vmatprep.subr.mxu0 0.0
      %917 = vmatpush1.msra.mxu0 0.0
      %918 = vmatprep.subr.mxu0 0.0
      %919 = vmatpush1.msra.mxu0 0.0
      %920 = vmatprep.subr.mxu0 0.0
      %921 = vmatpush1.msra.mxu0 0.0
      %922 = vmatprep.subr.mxu0 0.0
      %923 = vmatpush1.msra.mxu0 0.0
      %924 = vmatprep.subr.mxu0 0.0
      %925 = vmatpush1.msra.mxu0 0.0
      %926 = vmatprep.subr.mxu0 0.0
      %927 = vmatpush1.msra.mxu0 0.0
      %928 = vmatprep.subr.mxu0 0.0
      %929 = vmatpush1.msra.mxu0 0.0
      %930 = vmatprep.subr.mxu0 0.0
      %931 = vmatpush1.msra.mxu0 0.0
      %932 = vmatprep.subr.mxu0 0.0
      %933 = vmatpush1.msra.mxu0 0.0
      %934 = vmatprep.subr.mxu0 0.0
      %935 = vmatpush1.msra.mxu0 0.0
      %936 = vmatprep.subr.mxu0 0.0
      %937 = vmatpush1.msra.mxu0 0.0
      %938 = vmatprep.subr.mxu0 0.0
      %939 = vmatpush1.msra.mxu0 0.0
      %940 = vmatprep.subr.mxu0 0.0
      %941 = vmatpush1.msra.mxu0 0.0
      %942 = vmatprep.subr.mxu0 0.0
      %943 = vmatpush1.msra.mxu0 0.0
      %944 = vmatprep.subr.mxu0 0.0
      %945 = vmatpush1.msra.mxu0 0.0
      %946 = vmatprep.subr.mxu0 0.0
      %947 = vmatpush1.msra.mxu0 0.0
      %948 = vmatprep.subr.mxu0 0.0
      %949 = vmatpush1.msra.mxu0 0.0
      %950 = vmatprep.subr.mxu0 0.0
      %951 = vmatpush1.msra.mxu0 0.0
      %952 = vmatprep.subr.mxu0 0.0
      %953 = vmatpush1.msra.mxu0 0.0
      %954 = vmatprep.subr.mxu0 0.0
      %955 = vmatpush1.msra.mxu0 0.0
      %956 = vmatprep.subr.mxu0 0.0
      %957 = vmatpush1.msra.mxu0 0.0
      %958 = vmatprep.subr.mxu0 0.0
      %959 = vmatpush1.msra.mxu0 0.0
      %960 = vmatprep.subr.mxu0 0.0
      %961 = vmatpush1.msra.mxu0 0.0
      %962 = vmatprep.subr.mxu0 0.0
      %963 = vmatpush1.msra.mxu0 0.0
      %964 = vmatprep.subr.mxu0 0.0
      %965 = vmatpush1.msra.mxu0 0.0
      %966 = vmatprep.subr.mxu0 0.0
      %967 = vmatpush1.msra.mxu0 0.0
      %968 = vmatprep.subr.mxu0 0.0
      %969 = vmatpush1.msra.mxu0 0.0
      %970 = vmatprep.subr.mxu0 0.0
      %971 = vmatpush1.msra.mxu0 0.0
      %972 = vmatprep.subr.mxu0 0.0
      %973 = vmatpush1.msra.mxu0 0.0
      %974 = vmatprep.mubr.f32.mxu0 0.0
      %975 = vmatmul.mubr.f32.gmra.mrb[0].mxu0 %v567
      %v976 = vpop.f32.mrb[0].mxu0
      %v977 = vadd.f32 0.0, %v976
      %v978 = vpop.f32.mrb[0].mxu0
      %979 = vmatprep.mubr.f32.mxu0 0.0
      %980 = vmatmul.mubr.f32.gmra.mrb[0].mxu0 %v570
      %v981 = vpop.f32.mrb[0].mxu0
      %v982 = vadd.f32 0.0, %v981
      %v983 = vpop.f32.mrb[0].mxu0
      %984 = vdwg.mxu0
      %v985 = vsub.f32 %v904, %v977
      %v986 = vsub.f32 %v905, %v982
      %v987 = vmul.f32 %v900, 0.01
      %v988 = vmul.f32 %v901, 0.01
      %v989 = vadd.f32 %v813, %v987
      %v990 = vadd.f32 %v814, %v988
      %v991 = vmul.f32 %v985, 0.1
      %v992 = vmul.f32 %v986, 0.1
      %v993 = vadd.f32 %v989, %v991
      %v994 = vadd.f32 %v990, %v992
      %v995 = vld [vmem:[#allocation3] sm:$0xff]
      %v996 = vld [vmem:[#allocation3 + $0x8] sm:$0xff]
      %v997 = vmul.f32 %v995, 0.9
      %v998 = vmul.f32 %v996, 0.9
      %v999 = vmul.f32 %v993, 0.1
      %v1000 = vmul.f32 %v994, 0.1
      %v1001 = vadd.f32 %v997, %v999
      %v1002 = vadd.f32 %v998, %v1000
      %v1003 = vld [vmem:[#allocation4] sm:$0xff]
      %v1004 = vld [vmem:[#allocation4 + $0x8] sm:$0xff]
      %v1005 = vmul.f32 %v1003, 0.999
      %v1006 = vmul.f32 %v1004, 0.999
      %v1007 = vmul.f32 %v993, %v993
      %v1008 = vmul.f32 %v994, %v994
      %v1009 = vmul.f32 %v1007, 0.001
      %v1010 = vmul.f32 %v1008, 0.001
      %v1011 = vadd.f32 %v1005, %v1009
      %v1012 = vadd.f32 %v1006, %v1010
      %1013 = vst.msk [vmem:[#allocation3] sm:$0xff] %vm57, %v1001
      %1014 = vst.msk [vmem:[#allocation3 + $0x8] sm:$0xff] %vm57, %v1002
      %1015 = vst.msk [vmem:[#allocation4] sm:$0xff] %vm57, %v1011
      %1016 = vst.msk [vmem:[#allocation4 + $0x8] sm:$0xff] %vm57, %v1012
      %v1017 = vrsqrt.pop %v1011
      %v1018 = vmul.f32 %v1011, %v1017
      %vm1019 = vcmp.eq.f32.partialorder %v1011, inf
      %v1020 = vsel %vm1019, %v1011, %v1018
      %vm1021 = vcmp.eq.f32.partialorder %v1011, 0.0
      %v1022 = vand.u32 %v1011, 2147483648
      %v1023 = vsel %vm1021, %v1022, %v1020
      %v1024 = vrsqrt.pop %v1012
      %v1025 = vmul.f32 %v1012, %v1024
      %vm1026 = vcmp.eq.f32.partialorder %v1012, inf
      %v1027 = vsel %vm1026, %v1012, %v1025
      %vm1028 = vcmp.eq.f32.partialorder %v1012, 0.0
      %v1029 = vand.u32 %v1012, 2147483648
      %v1030 = vsel %vm1028, %v1029, %v1027
      %s1031 = sld [smem:[#allocation9 + %s312]]
      %v1032 = vstv %s1031
      %v1033 = vmul.f32 %v1023, %v1032
      %v1034 = vmul.f32 %v1030, %v1032
      %v1035 = vadd.f32 %v1033, 1e-08
      %v1036 = vadd.f32 %v1034, 1e-08
      %s1037 = sld [smem:[#allocation5 + %s312]]
      %v1038 = vrcp.pop %v1035
      %v1039 = vmul.f32 %v1001, %v1038
      %v1040 = vrcp.pop %v1036
      %v1041 = vmul.f32 %v1002, %v1040
      %v1042 = vstv %s1037
      %v1043 = vmul.f32 %v1042, %v1039
      %v1044 = vmul.f32 %v1042, %v1041
      %v1045 = vsub.f32 %v317, %v1043
      %v1046 = vsub.f32 %v318, %v1044
      %1047 = vst.msk [vmem:[#allocation2] sm:$0xff] %vm57, %v1045
      %1048 = vst.msk [vmem:[#allocation2 + $0x8] sm:$0xff] %vm57, %v1046
    $region30: #{fuzzy_elpigraph_forward.1} parent=1 // loop_footer
      %s316 = sadd.s32 1, %s312
    $region31: #{fuzzy_elpigraph_forward.1} parent=1 // loop_footer_branch
      %311 = sbr.rel target = $region27
    $region32: #{fuzzy_elpigraph_forward.1} parent=1 // loop_exit
      _
    %v1049 = vld [vmem:[#allocation2] sm:$0xff]
    %v1050 = vld [vmem:[#allocation2 + $0x8] sm:$0xff]
    %v1051 = vmul.f32 %v1049, %v1049
    %v1052 = vmul.f32 %v1050, %v1050
    %v1053 = vsel %vm57, %v1051, 0.0
    %1054 = vadd.xlane.f32.xlu0 %v1053
    %v1055 = vpop.xlane.xlu0 %1054
    %v1056 = vsel %vm57, %v1052, 0.0
    %1057 = vadd.xlane.f32.xlu0 %v1056
    %v1058 = vpop.xlane.xlu0 %1057
    %v1060 = vsel %vm57, %v1049, 0
    %v1063 = vsel %vm57, %v1050, 0
    %v1066 = vsel %vm57, %v47, 0
    %v1069 = vsel %vm57, %v48, 0
    %v1072 = vsel %vm57, %v49, 0
    %v1075 = vsel %vm57, %v50, 0
    %v1078 = vsel %vm57, %v51, 0
    %v1081 = vsel %vm57, %v52, 0
    %v1084 = vsel %vm57, %v53, 0
    %v1087 = vsel %vm57, %v54, 0
    %1089 = vmatprep.subr.mxu0 0.0
    %1090 = vmatpush1.xpose.msra.mxu0 %v1066
    %1091 = vmatprep.subr.mxu0 0.0
    %1092 = vmatpush1.xpose.msra.mxu0 %v1069
    %1093 = vmatprep.subr.mxu0 0.0
    %1094 = vmatpush1.xpose.msra.mxu0 %v1072
    %1095 = vmatprep.subr.mxu0 0.0
    %1096 = vmatpush1.xpose.msra.mxu0 %v1075
    %1097 = vmatprep.subr.mxu0 0.0
    %1098 = vmatpush1.xpose.msra.mxu0 %v1078
    %1099 = vmatprep.subr.mxu0 0.0
    %1100 = vmatpush1.xpose.msra.mxu0 %v1081
    %1101 = vmatprep.subr.mxu0 0.0
    %1102 = vmatpush1.xpose.msra.mxu0 %v1084
    %1103 = vmatprep.subr.mxu0 0.0
    %1104 = vmatpush1.xpose.msra.mxu0 %v1087
    %1105 = vmatprep.subr.mxu0 0.0
    %1106 = vmatpush1.xpose.msra.mxu0 0.0
    %1107 = vmatprep.subr.mxu0 0.0
    %1108 = vmatpush1.xpose.msra.mxu0 0.0
    %1109 = vmatprep.subr.mxu0 0.0
    %1110 = vmatpush1.xpose.msra.mxu0 0.0
    %1111 = vmatprep.subr.mxu0 0.0
    %1112 = vmatpush1.xpose.msra.mxu0 0.0
    %1113 = vmatprep.subr.mxu0 0.0
    %1114 = vmatpush1.xpose.msra.mxu0 0.0
    %1115 = vmatprep.subr.mxu0 0.0
    %1116 = vmatpush1.xpose.msra.mxu0 0.0
    %1117 = vmatprep.subr.mxu0 0.0
    %1118 = vmatpush1.xpose.msra.mxu0 0.0
    %1119 = vmatprep.subr.mxu0 0.0
    %1120 = vmatpush1.xpose.msra.mxu0 0.0
    %1121 = vmatprep.subr.mxu0 0.0
    %1122 = vmatpush1.xpose.msra.mxu0 0.0
    %1123 = vmatprep.subr.mxu0 0.0
    %1124 = vmatpush1.xpose.msra.mxu0 0.0
    %1125 = vmatprep.subr.mxu0 0.0
    %1126 = vmatpush1.xpose.msra.mxu0 0.0
    %1127 = vmatprep.subr.mxu0 0.0
    %1128 = vmatpush1.xpose.msra.mxu0 0.0
    %1129 = vmatprep.subr.mxu0 0.0
    %1130 = vmatpush1.xpose.msra.mxu0 0.0
    %1131 = vmatprep.subr.mxu0 0.0
    %1132 = vmatpush1.xpose.msra.mxu0 0.0
    %1133 = vmatprep.subr.mxu0 0.0
    %1134 = vmatpush1.xpose.msra.mxu0 0.0
    %1135 = vmatprep.subr.mxu0 0.0
    %1136 = vmatpush1.xpose.msra.mxu0 0.0
    %1137 = vmatprep.subr.mxu0 0.0
    %1138 = vmatpush1.xpose.msra.mxu0 0.0
    %1139 = vmatprep.subr.mxu0 0.0
    %1140 = vmatpush1.xpose.msra.mxu0 0.0
    %1141 = vmatprep.subr.mxu0 0.0
    %1142 = vmatpush1.xpose.msra.mxu0 0.0
    %1143 = vmatprep.subr.mxu0 0.0
    %1144 = vmatpush1.xpose.msra.mxu0 0.0
    %1145 = vmatprep.subr.mxu0 0.0
    %1146 = vmatpush1.xpose.msra.mxu0 0.0
    %1147 = vmatprep.subr.mxu0 0.0
    %1148 = vmatpush1.xpose.msra.mxu0 0.0
    %1149 = vmatprep.subr.mxu0 0.0
    %1150 = vmatpush1.xpose.msra.mxu0 0.0
    %1151 = vmatprep.subr.mxu0 0.0
    %1152 = vmatpush1.xpose.msra.mxu0 0.0
    %1153 = vmatprep.mubr.f32.mxu0 0.0
    %1154 = vmatmul.mubr.f32.gmra.mrb[0].mxu0 %v1060
    %v1155 = vpop.f32.mrb[0].mxu0
    %v1156 = vadd.f32 0.0, %v1155
    %v1157 = vpop.f32.mrb[0].mxu0
    %1158 = vmatprep.mubr.f32.mxu0 0.0
    %1159 = vmatmul.mubr.f32.gmra.mrb[0].mxu0 %v1063
    %v1160 = vpop.f32.mrb[0].mxu0
    %v1161 = vadd.f32 0.0, %v1160
    %v1162 = vpop.f32.mrb[0].mxu0
    %1163 = vdwg.mxu0
    %v1172 = vlaneseq
    %v1173 = vshrl.u32 %v1172, 7
    %v1174 = vsub.s32 %v150, %v1173
    %v1175 = vrot.slane %v251, %v1174
    %v1176 = vlaneseq
    %v1177 = vshrl.u32 %v1176, 7
    %v1178 = vsub.s32 %v155, %v1177
    %v1179 = vrot.slane %v254, %v1178
    %v1180 = vsel %vm160, %v1179, %v1175
    %v1181 = vadd.s32 %v150, 4294967280
    %v1182 = vlaneseq
    %v1183 = vshrl.u32 %v1182, 7
    %v1184 = vsub.s32 %v1181, %v1183
    %v1185 = vrot.slane %v257, %v1184
    %vm1186 = vcmask 195712
    %v1187 = vsel %vm1186, %v1185, %v1180
    %v1188 = vadd.s32 %v150, 4294967272
    %v1189 = vlaneseq
    %v1190 = vshrl.u32 %v1189, 7
    %v1191 = vsub.s32 %v1188, %v1190
    %v1192 = vrot.slane %v260, %v1191
    %vm1193 = vcmask 261312
    %v1194 = vsel %vm1193, %v1192, %v1187
    %v1195 = vadd.s32 %v150, 4294967264
    %v1196 = vlaneseq
    %v1197 = vshrl.u32 %v1196, 7
    %v1198 = vsub.s32 %v1195, %v1197
    %v1199 = vrot.slane %v263, %v1198
    %vm1200 = vcmask 326912
    %v1201 = vsel %vm1200, %v1199, %v1194
    %v1202 = vadd.s32 %v150, 4294967256
    %v1203 = vlaneseq
    %v1204 = vshrl.u32 %v1203, 7
    %v1205 = vsub.s32 %v1202, %v1204
    %v1206 = vrot.slane %v266, %v1205
    %vm1207 = vcmask 392512
    %v1208 = vsel %vm1207, %v1206, %v1201
    %v1209 = vadd.s32 %v150, 4294967248
    %v1210 = vlaneseq
    %v1211 = vshrl.u32 %v1210, 7
    %v1212 = vsub.s32 %v1209, %v1211
    %v1213 = vrot.slane %v269, %v1212
    %vm1214 = vcmask 458112
    %v1215 = vsel %vm1214, %v1213, %v1208
    %v1216 = vadd.s32 %v150, 4294967240
    %v1217 = vlaneseq
    %v1218 = vshrl.u32 %v1217, 7
    %v1219 = vsub.s32 %v1216, %v1218
    %v1220 = vrot.slane %v272, %v1219
    %vm1221 = vcmask 523712
    %v1222 = vsel %vm1221, %v1220, %v1215
    %v1223 = vsel %vm162, %v1222, %v1222
    %v1224 = vsel %vm164, %v1222, %v1223
    %v1225 = vsel %vm166, %v1222, %v1224
    %v1226 = vsel %vm168, %v1222, %v1225
    %v1227 = vsel %vm170, %v1222, %v1226
    %v1228 = vsel %vm172, %v1222, %v1227
    %v1230 = vadd.f32 %v1055, %v1228
    %v1231 = vadd.f32 %v1058, %v1228
    %v1232 = vmul.f32 %v1156, 2.0
    %v1233 = vmul.f32 %v1161, 2.0
    %v1234 = vsub.f32 %v1230, %v1232
    %v1235 = vsub.f32 %v1231, %v1233
    %v1236 = vmax.f32 %v1234, 0.0
    %v1237 = vmax.f32 %v1235, 0.0
    %vm1238 = vcmask 523264
    %v1239 = vsel %vm1238, %v1236, inf
    %v1240 = vsel %vm1238, %v1237, inf
    %v1241 = vmin.f32 %v1239, %v1240
    %1242 = vmin.xlane.f32.xlu0 %v1241
    %v1243 = vpop.xlane.xlu0 %1242
    %v1244 = vrot.slane %v1243, 4
    %v1245 = vmin.f32 %v1243, %v1244
    %v1246 = vrot.slane %v1245, 2
    %v1247 = vmin.f32 %v1245, %v1246
    %v1248 = vrot.slane %v1247, 1
    %v1249 = vmin.f32 %v1247, %v1248
    %s1250 = vtos %v1249
    %v1251 = vstv %s1250
    %v1252 = vadd.f32 %v1236, %v1251
    %v1253 = vadd.f32 %v1237, %v1251
    %v1254 = vmax.f32 %v1252, 0.0
    %v1255 = vmax.f32 %v1253, 0.0
    %v1256 = vmin.f32 %v1254, 10.0
    %v1257 = vmin.f32 %v1255, 10.0
    %v1258 = vsel %vm1238, %v1256, inf
    %v1259 = vsel %vm1238, %v1257, inf
    %v1260 = vmin.f32 %v1258, %v1259
    %v1261 = vrot.slane %v1260, 4
    %v1262 = vmin.f32 %v1260, %v1261
    %v1263 = vrot.slane %v1262, 2
    %v1264 = vmin.f32 %v1262, %v1263
    %v1265 = vrot.slane %v1264, 1
    %v1266 = vmin.f32 %v1264, %v1265
    %v1267 = vsub.f32 %v1256, %v1266
    %v1268 = vsub.f32 %v1257, %v1266
    %v1269 = vmul.f32 %v1267, -5.0
    %v1270 = vmul.f32 %v1268, -5.0
    %v1271 = vmul.f32 %v1269, 1.442695
    %v1272 = vpow.pop %v1271
    %v1273 = vmul.f32 %v1270, 1.442695
    %v1274 = vpow.pop %v1273
    %v1275 = vsel %vm1238, %v1272, 0.0
    %v1276 = vsel %vm1238, %v1274, 0.0
    %v1277 = vadd.f32 %v1275, %v1276
    %v1278 = vrot.slane %v1277, 4
    %v1279 = vadd.f32 %v1277, %v1278
    %v1280 = vrot.slane %v1279, 2
    %v1281 = vadd.f32 %v1279, %v1280
    %v1282 = vrot.slane %v1281, 1
    %v1283 = vadd.f32 %v1281, %v1282
    %v1284 = vrcp.pop %v1283
    %v1285 = vmul.f32 %v1272, %v1284
    %v1286 = vmul.f32 %v1274, %v1284
    %v1287 = vmul.f32 %v1236, %v1285
    %v1288 = vmul.f32 %v1237, %v1286
    %v1289 = vsel %vm1238, %v1287, 0.0
    %v1290 = vsel %vm1238, %v1288, 0.0
    %v1291 = vadd.f32 %v1289, %v1290
    %v1292 = vrot.slane %v1291, 4
    %v1293 = vadd.f32 %v1291, %v1292
    %v1294 = vrot.slane %v1293, 2
    %v1295 = vadd.f32 %v1293, %v1294
    %v1296 = vrot.slane %v1295, 1
    %v1297 = vadd.f32 %v1295, %v1296
    %v1299 = vsel %vm190, %v239, 0
    %v1302 = vsel %vm190, %v240, 0
    %1304 = vmatprep.subr.mxu0 0.0
    %1305 = vmatpush1.msra.mxu0 %v1049
    %1306 = vmatprep.subr.mxu0 0.0
    %1307 = vmatpush1.msra.mxu0 %v1050
    %1308 = vmatprep.subr.mxu0 0.0
    %1309 = vmatpush1.msra.mxu0 0.0
    %1310 = vmatprep.subr.mxu0 0.0
    %1311 = vmatpush1.msra.mxu0 0.0
    %1312 = vmatprep.subr.mxu0 0.0
    %1313 = vmatpush1.msra.mxu0 0.0
    %1314 = vmatprep.subr.mxu0 0.0
    %1315 = vmatpush1.msra.mxu0 0.0
    %1316 = vmatprep.subr.mxu0 0.0
    %1317 = vmatpush1.msra.mxu0 0.0
    %1318 = vmatprep.subr.mxu0 0.0
    %1319 = vmatpush1.msra.mxu0 0.0
    %1320 = vmatprep.subr.mxu0 0.0
    %1321 = vmatpush1.msra.mxu0 0.0
    %1322 = vmatprep.subr.mxu0 0.0
    %1323 = vmatpush1.msra.mxu0 0.0
    %1324 = vmatprep.subr.mxu0 0.0
    %1325 = vmatpush1.msra.mxu0 0.0
    %1326 = vmatprep.subr.mxu0 0.0
    %1327 = vmatpush1.msra.mxu0 0.0
    %1328 = vmatprep.subr.mxu0 0.0
    %1329 = vmatpush1.msra.mxu0 0.0
    %1330 = vmatprep.subr.mxu0 0.0
    %1331 = vmatpush1.msra.mxu0 0.0
    %1332 = vmatprep.subr.mxu0 0.0
    %1333 = vmatpush1.msra.mxu0 0.0
    %1334 = vmatprep.subr.mxu0 0.0
    %1335 = vmatpush1.msra.mxu0 0.0
    %1336 = vmatprep.subr.mxu0 0.0
    %1337 = vmatpush1.msra.mxu0 0.0
    %1338 = vmatprep.subr.mxu0 0.0
    %1339 = vmatpush1.msra.mxu0 0.0
    %1340 = vmatprep.subr.mxu0 0.0
    %1341 = vmatpush1.msra.mxu0 0.0
    %1342 = vmatprep.subr.mxu0 0.0
    %1343 = vmatpush1.msra.mxu0 0.0
    %1344 = vmatprep.subr.mxu0 0.0
    %1345 = vmatpush1.msra.mxu0 0.0
    %1346 = vmatprep.subr.mxu0 0.0
    %1347 = vmatpush1.msra.mxu0 0.0
    %1348 = vmatprep.subr.mxu0 0.0
    %1349 = vmatpush1.msra.mxu0 0.0
    %1350 = vmatprep.subr.mxu0 0.0
    %1351 = vmatpush1.msra.mxu0 0.0
    %1352 = vmatprep.subr.mxu0 0.0
    %1353 = vmatpush1.msra.mxu0 0.0
    %1354 = vmatprep.subr.mxu0 0.0
    %1355 = vmatpush1.msra.mxu0 0.0
    %1356 = vmatprep.subr.mxu0 0.0
    %1357 = vmatpush1.msra.mxu0 0.0
    %1358 = vmatprep.subr.mxu0 0.0
    %1359 = vmatpush1.msra.mxu0 0.0
    %1360 = vmatprep.subr.mxu0 0.0
    %1361 = vmatpush1.msra.mxu0 0.0
    %1362 = vmatprep.subr.mxu0 0.0
    %1363 = vmatpush1.msra.mxu0 0.0
    %1364 = vmatprep.subr.mxu0 0.0
    %1365 = vmatpush1.msra.mxu0 0.0
    %1366 = vmatprep.subr.mxu0 0.0
    %1367 = vmatpush1.msra.mxu0 0.0
    %1368 = vmatprep.mubr.f32.mxu0 0.0
    %1369 = vmatmul.mubr.f32.gmra.mrb[0].mxu0 %v1299
    %v1370 = vpop.f32.mrb[0].mxu0
    %v1371 = vadd.f32 0.0, %v1370
    %v1372 = vpop.f32.mrb[0].mxu0
    %1373 = vmatprep.mubr.f32.mxu0 0.0
    %1374 = vmatmul.mubr.f32.gmra.mrb[0].mxu0 %v1302
    %v1375 = vpop.f32.mrb[0].mxu0
    %v1376 = vadd.f32 0.0, %v1375
    %v1377 = vpop.f32.mrb[0].mxu0
    %1378 = vdwg.mxu0
    %v1379 = vrcp.pop %v287
    %v1380 = vmul.f32 %v1371, %v1379
    %v1381 = vrcp.pop %v290
    %v1382 = vmul.f32 %v1376, %v1381
    %vm1383 = vcmp.eq.s32.totalorder %v293, 1
    %vm1384 = vcmp.eq.s32.totalorder %v294, 1
    %v1385 = vsel %vm1383, %v1380, 0.0
    %v1386 = vsel %vm1384, %v1382, 0.0
    %v1387 = vsub.f32 %v1049, %v1385
    %v1388 = vsub.f32 %v1050, %v1386
    %vm1389 = vcmask 516096
    %v1390 = vsel %vm1389, %v1297, 0.0
    %1391 = vadd.xlane.f32.xlu0 %v1390
    %v1392 = vpop.xlane.xlu0 %1391
    %v1393 = vrot.slane %v1392, 4
    %v1394 = vadd.f32 %v1392, %v1393
    %v1395 = vrot.slane %v1394, 2
    %v1396 = vadd.f32 %v1394, %v1395
    %v1397 = vrot.slane %v1396, 1
    %v1398 = vadd.f32 %v1396, %v1397
    %s1399 = vtos %v1398
    %s1400 = smul.f32 %s1399, 0.015625
    %1401 = vmatprep.subr.mxu0 0.0
    %1402 = vmatpush1.xpose.msra.mxu0 %v1060
    %1403 = vmatprep.subr.mxu0 0.0
    %1404 = vmatpush1.xpose.msra.mxu0 %v1063
    %1405 = vmatprep.subr.mxu0 0.0
    %1406 = vmatpush1.xpose.msra.mxu0 0.0
    %1407 = vmatprep.subr.mxu0 0.0
    %1408 = vmatpush1.xpose.msra.mxu0 0.0
    %1409 = vmatprep.subr.mxu0 0.0
    %1410 = vmatpush1.xpose.msra.mxu0 0.0
    %1411 = vmatprep.subr.mxu0 0.0
    %1412 = vmatpush1.xpose.msra.mxu0 0.0
    %1413 = vmatprep.subr.mxu0 0.0
    %1414 = vmatpush1.xpose.msra.mxu0 0.0
    %1415 = vmatprep.subr.mxu0 0.0
    %1416 = vmatpush1.xpose.msra.mxu0 0.0
    %1417 = vmatprep.subr.mxu0 0.0
    %1418 = vmatpush1.xpose.msra.mxu0 0.0
    %1419 = vmatprep.subr.mxu0 0.0
    %1420 = vmatpush1.xpose.msra.mxu0 0.0
    %1421 = vmatprep.subr.mxu0 0.0
    %1422 = vmatpush1.xpose.msra.mxu0 0.0
    %1423 = vmatprep.subr.mxu0 0.0
    %1424 = vmatpush1.xpose.msra.mxu0 0.0
    %1425 = vmatprep.subr.mxu0 0.0
    %1426 = vmatpush1.xpose.msra.mxu0 0.0
    %1427 = vmatprep.subr.mxu0 0.0
    %1428 = vmatpush1.xpose.msra.mxu0 0.0
    %1429 = vmatprep.subr.mxu0 0.0
    %1430 = vmatpush1.xpose.msra.mxu0 0.0
    %1431 = vmatprep.subr.mxu0 0.0
    %1432 = vmatpush1.xpose.msra.mxu0 0.0
    %1433 = vmatprep.subr.mxu0 0.0
    %1434 = vmatpush1.xpose.msra.mxu0 0.0
    %1435 = vmatprep.subr.mxu0 0.0
    %1436 = vmatpush1.xpose.msra.mxu0 0.0
    %1437 = vmatprep.subr.mxu0 0.0
    %1438 = vmatpush1.xpose.msra.mxu0 0.0
    %1439 = vmatprep.subr.mxu0 0.0
    %1440 = vmatpush1.xpose.msra.mxu0 0.0
    %1441 = vmatprep.subr.mxu0 0.0
    %1442 = vmatpush1.xpose.msra.mxu0 0.0
    %1443 = vmatprep.subr.mxu0 0.0
    %1444 = vmatpush1.xpose.msra.mxu0 0.0
    %1445 = vmatprep.subr.mxu0 0.0
    %1446 = vmatpush1.xpose.msra.mxu0 0.0
    %1447 = vmatprep.subr.mxu0 0.0
    %1448 = vmatpush1.xpose.msra.mxu0 0.0
    %1449 = vmatprep.subr.mxu0 0.0
    %1450 = vmatpush1.xpose.msra.mxu0 0.0
    %1451 = vmatprep.subr.mxu0 0.0
    %1452 = vmatpush1.xpose.msra.mxu0 0.0
    %1453 = vmatprep.subr.mxu0 0.0
    %1454 = vmatpush1.xpose.msra.mxu0 0.0
    %1455 = vmatprep.subr.mxu0 0.0
    %1456 = vmatpush1.xpose.msra.mxu0 0.0
    %1457 = vmatprep.subr.mxu0 0.0
    %1458 = vmatpush1.xpose.msra.mxu0 0.0
    %1459 = vmatprep.subr.mxu0 0.0
    %1460 = vmatpush1.xpose.msra.mxu0 0.0
    %1461 = vmatprep.subr.mxu0 0.0
    %1462 = vmatpush1.xpose.msra.mxu0 0.0
    %1463 = vmatprep.subr.mxu0 0.0
    %1464 = vmatpush1.xpose.msra.mxu0 0.0
    %1465 = vmatprep.mubr.f32.mxu0 0.0
    %1466 = vmatmul.mubr.f32.gmra.mrb[0].mxu0 %v1060
    %v1467 = vpop.f32.mrb[0].mxu0
    %v1468 = vadd.f32 0.0, %v1467
    %v1469 = vpop.f32.mrb[0].mxu0
    %1470 = vmatprep.mubr.f32.mxu0 0.0
    %1471 = vmatmul.mubr.f32.gmra.mrb[0].mxu0 %v1063
    %v1472 = vpop.f32.mrb[0].mxu0
    %v1473 = vadd.f32 0.0, %v1472
    %v1474 = vpop.f32.mrb[0].mxu0
    %1475 = vdwg.mxu0
    %v1478 = vlaneseq
    %v1479 = vshrl.u32 %v1478, 7
    %v1480 = vsub.s32 %v150, %v1479
    %v1481 = vrot.slane %v1055, %v1480
    %v1482 = vlaneseq
    %v1483 = vshrl.u32 %v1482, 7
    %v1484 = vsub.s32 %v155, %v1483
    %v1485 = vrot.slane %v1058, %v1484
    %v1486 = vsel %vm160, %v1485, %v1481
    %v1487 = vsel %vm162, %v1486, %v1486
    %v1488 = vsel %vm164, %v1486, %v1487
    %v1489 = vsel %vm166, %v1486, %v1488
    %v1490 = vsel %vm168, %v1486, %v1489
    %v1491 = vsel %vm170, %v1486, %v1490
    %v1492 = vsel %vm172, %v1486, %v1491
    %v1494 = vadd.f32 %v1055, %v1492
    %v1495 = vadd.f32 %v1058, %v1492
    %v1496 = vmul.f32 %v1468, 2.0
    %v1497 = vmul.f32 %v1473, 2.0
    %v1498 = vsub.f32 %v1494, %v1496
    %v1499 = vsub.f32 %v1495, %v1497
    %v1500 = vmax.f32 %v1498, 0.0
    %v1501 = vmax.f32 %v1499, 0.0
    %v1502 = vmul.f32 %v1500, %v239
    %v1503 = vmul.f32 %v1501, %v240
    %v1504 = vmul.f32 %v1502, %v283
    %v1505 = vmul.f32 %v1503, %v284
    %v1506 = vsel %vm190, %v1504, 0.0
    %v1507 = vsel %vm190, %v1505, 0.0
    %v1508 = vadd.f32 %v1506, %v1507
    %1509 = vadd.xlane.f32.xlu0 %v1508
    %v1510 = vpop.xlane.xlu0 %1509
    %v1511 = vrot.slane %v1510, 4
    %v1512 = vadd.f32 %v1510, %v1511
    %v1513 = vrot.slane %v1512, 2
    %v1514 = vadd.f32 %v1512, %v1513
    %v1515 = vrot.slane %v1514, 1
    %v1516 = vadd.f32 %v1514, %v1515
    %s1517 = vtos %v1516
    %v1518 = vmul.f32 %v1387, %v1387
    %v1519 = vmul.f32 %v1388, %v1388
    %v1520 = vsel %vm57, %v1518, 0.0
    %1521 = vadd.xlane.f32.xlu0 %v1520
    %v1522 = vpop.xlane.xlu0 %1521
    %v1523 = vsel %vm57, %v1519, 0.0
    %1524 = vadd.xlane.f32.xlu0 %v1523
    %v1525 = vpop.xlane.xlu0 %1524
    %v1526 = vmul.f32 %v1522, %v295
    %v1527 = vmul.f32 %v1525, %v296
    %vm1528 = vcmask 7168
    %v1529 = vsel %vm1528, %v1526, 0.0
    %v1530 = vsel %vm1528, %v1527, 0.0
    %v1531 = vadd.f32 %v1529, %v1530
    %1532 = vadd.xlane.f32.xlu0 %v1531
    %v1533 = vpop.xlane.xlu0 %1532
    %v1534 = vrot.slane %v1533, 4
    %v1535 = vadd.f32 %v1533, %v1534
    %v1536 = vrot.slane %v1535, 2
    %v1537 = vadd.f32 %v1535, %v1536
    %v1538 = vrot.slane %v1537, 1
    %v1539 = vadd.f32 %v1537, %v1538
    %s1540 = vtos %v1539
    %s1541 = smul.f32 %s1517, 0.01
    %s1542 = sadd.f32 %s1400, %s1541
    %s1543 = smul.f32 %s1540, 0.1
    %s1544 = sadd.f32 %s1542, %s1543
    %1545 = vst.msk [vmem:[%s4] sm:$0xff] %vm57, %v1049
    %1546 = vst.msk [vmem:[%s4 + $0x8] sm:$0xff] %vm57, %v1050
    %1547 = vst.msk [vmem:[#allocation11] sm:$0xff] %vm190, %v239
    %1548 = vst.msk [vmem:[#allocation11 + $0x8] sm:$0xff] %vm190, %v240
    %s1549 = scalar_lea.smem [#allocation12], 0
    %1550 = sst [smem:[%s1549]] %s1544
    // Predicated region
    $region33: #{fuzzy_elpigraph_forward.1} parent=1 // pred_check
      _
    $region34: #{fuzzy_elpigraph_forward.1} parent=1 // pred_check_branch
      %1552 = sbr.rel (0) target = $region36
    $region35: #{fuzzy_elpigraph_forward.1} parent=1 // pred_region
      _
    $region36: #{fuzzy_elpigraph_forward.1} parent=1 // pred_fallthru
      _
    // Predicated region
    $region37: #{fuzzy_elpigraph_forward.1} parent=1 // pred_check
      _
    $region38: #{fuzzy_elpigraph_forward.1} parent=1 // pred_check_branch
      %1554 = sbr.rel (0) target = $region40
    $region39: #{fuzzy_elpigraph_forward.1} parent=1 // pred_region
      %s1556 = ssub.s32 256, 256
      %1557 = vsyncadd [#allocation6], %s1556
      %s1558 = sshll.u32 [#allocation11], 4
      %s1559 = int_to_ptr.vmem [resolvable:$true] %s1558
      %1564 = dma.vmem_to_hbm [thread:$0]  %s1559, 256, %s5, [#allocation6], 128, 128, 8
    $region40: #{fuzzy_elpigraph_forward.1} parent=1 // pred_fallthru
      _
    // Predicated region
    $region41: #{fuzzy_elpigraph_forward.1} parent=1 // pred_check
      _
    $region42: #{fuzzy_elpigraph_forward.1} parent=1 // pred_check_branch
      %1566 = sbr.rel (0) target = $region44
    $region43: #{fuzzy_elpigraph_forward.1} parent=1 // pred_region
      %s1568 = ssub.s32 16, 16
      %1569 = vsyncadd [#allocation7], %s1568
      %1572 = dma.smem_to_hbm [#allocation12], 16, %s6, [#allocation7]
    $region44: #{fuzzy_elpigraph_forward.1} parent=1 // pred_fallthru
      _
    // Predicated region
    $region45: #{fuzzy_elpigraph_forward.1} parent=1 // pred_check
      _
    $region46: #{fuzzy_elpigraph_forward.1} parent=1 // pred_check_branch
      %1574 = sbr.rel (0) target = $region48
    $region47: #{fuzzy_elpigraph_forward.1} parent=1 // pred_region
      _
    $region48: #{fuzzy_elpigraph_forward.1} parent=1 // pred_fallthru
      _
    // Predicated region
    $region49: #{fuzzy_elpigraph_forward.1} parent=1 // pred_check
      _
    $region50: #{fuzzy_elpigraph_forward.1} parent=1 // pred_check_branch
      %1576 = sbr.rel (0) target = $region52
    $region51: #{fuzzy_elpigraph_forward.1} parent=1 // pred_region
      %1577 = dma.done [#allocation6], 256
    $region52: #{fuzzy_elpigraph_forward.1} parent=1 // pred_fallthru
      _
    // Predicated region
    $region53: #{fuzzy_elpigraph_forward.1} parent=1 // pred_check
      _
    $region54: #{fuzzy_elpigraph_forward.1} parent=1 // pred_check_branch
      %1579 = sbr.rel (0) target = $region56
    $region55: #{fuzzy_elpigraph_forward.1} parent=1 // pred_region
      %1580 = dma.done [#allocation7], 16
    $region56: #{fuzzy_elpigraph_forward.1} parent=1 // pred_fallthru
      _
    %1581 = sfence
    %1582 = vsyncpa [#allocation6], 1
    %1583 = vsyncpa [#allocation7], 1
    %1584 = vsyncpa [#allocation8], 1
    %1585 = vsyncpa [#allocation10], 1

</llo_original>
